<compile_context>
chip_gen: v6e
topology: v6e:2x2x1
jax: 0.10.0
libtpu: 0.0.40
codegen_flags: <defaults>
</compile_context>

<pallas_src>
import jax
import jax.numpy as jnp
from jax.experimental import pallas as pl
from jax.experimental.pallas import tpu as pltpu

KH = KW = 4          # Conv2d kernel size used by every ConvBlock
PAD = 1              # padding=1, padding_mode='reflect'
EPS = 1e-5           # InstanceNorm2d default eps
NEG_SLOPE = 0.2      # LeakyReLU(0.2)
LANE = 128           # TPU lane width; Cout is padded to a multiple of this


def _round_up(x, m):
    return (x + m - 1) // m * m


def _pick_row_block(OH, OW, max_m=1024):
    """Largest divisor R of OH with R*OW <= max_m (fallback 1)."""
    best = 1
    for cand in range(1, OH + 1):
        if OH % cand == 0 and cand * OW <= max_m:
            best = cand
    return best


# ---------------------------------------------------------------------------
# Fused ConvBlock kernel (one batch sample per grid step).
#   x_ref     : (Hin*OW, Kf)   bf16  padded / s2d'ed / kj-folded, spatially flat
#   w_ref     : (TKH, Kf, Cp)  bf16  per-ki weights, kj+channels folded into Kf
#   g_ref     : (1, Cp)        f32   InstanceNorm gamma (zero-padded)
#   b_ref     : (1, Cp)        f32   InstanceNorm beta  (zero-padded)
#   o_ref     : (OH*OW, Cp)    bf16  ConvBlock output, spatially flat
#   stage_ref : (OH*OW, Cp)    f32   VMEM scratch, pre-norm conv staging
#
# For output element m = oh*OW + ow the contribution of vertical tap ki is
# x_ref[m + ki*OW, :] @ w_ref[ki], so a block of M = R*OW output rows is just
# TKH contiguous-slice matmuls accumulated in VMEM.
# ---------------------------------------------------------------------------
def _make_convblock_kernel(OH, OW, TKH, R):
    M = R * OW                       # matmul M per row block
    NB = OH // R                     # number of row blocks (static)
    inv_m = 1.0 / float(OH * OW)

    def kernel(x_ref, w_ref, g_ref, b_ref, o_ref, stage_ref):
        Cp = stage_ref.shape[-1]

        # Pass 1: conv row blocks (tap-accumulated MXU matmuls, f32 accum in
        # VMEM) + one-pass per-channel sum / sum-of-squares per block.
        s1 = jnp.zeros((1, Cp), jnp.float32)
        s2 = jnp.zeros((1, Cp), jnp.float32)
        for blk in range(NB):                      # static, fully unrolled
            m0 = blk * M
            rows = pl.ds(m0, M)
            stage_ref[rows, :] = jnp.dot(
                x_ref[pl.ds(m0, M), :], w_ref[0],
                preferred_element_type=jnp.float32)
            for ki in range(1, TKH):               # <= 3 accumulate-adds
                stage_ref[rows, :] += jnp.dot(
                    x_ref[pl.ds(m0 + ki * OW, M), :], w_ref[ki],
                    preferred_element_type=jnp.float32)
            blk_v = stage_ref[rows, :]
            s1 = s1 + jnp.sum(blk_v, axis=0, keepdims=True)
            s2 = s2 + jnp.sum(blk_v * blk_v, axis=0, keepdims=True)

        # InstanceNorm2d stats (f32, biased variance, eps=1e-5) fused with the
        # affine transform into one per-channel scale/shift.  One-pass
        # E[x^2]-E[x]^2 is guarded by max(., 0); fine in f32 for GAN-scale
        # activations.  (The Conv2d bias cancels exactly here.)
        mean = s1 * inv_m
        var = jnp.maximum(s2 * inv_m - mean * mean, 0.0)
        inv_std = jax.lax.rsqrt(var + EPS)
        scale = g_ref[...] * inv_std               # (1, Cp)
        shift = b_ref[...] - mean * scale          # (1, Cp)

        # Pass 2: block-wise normalize + LeakyReLU(0.2), single bf16 store.
        for blk in range(NB):
            rows = pl.ds(blk * M, M)
            y = stage_ref[rows, :] * scale + shift
            o_ref[rows, :] = jnp.where(y >= 0.0, y, NEG_SLOPE * y).astype(o_ref.dtype)

    return kernel


def _convblock_pallas(x2d, w, gamma, beta, OH, OW, TKH, R):
    B, HinOW, Kf = x2d.shape
    _, _, Cp = w.shape
    OHW = OH * OW
    kernel = _make_convblock_kernel(OH, OW, TKH, R)

    # Size scoped VMEM from the actual buffers (double-buffered ins/outs plus
    # the f32 staging scratch), clamped to [32 MiB, 64 MiB] so it is safe on
    # v5e/v6e/v7x alike.
    need = (2 * (HinOW * Kf * 2 + TKH * Kf * Cp * 2 + OHW * Cp * 2 + 2 * Cp * 4)
            + OHW * Cp * 4)
    vmem_limit = int(min(64 * 2**20, max(32 * 2**20, 2 * need)))

    return pl.pallas_call(
        kernel,
        out_shape=jax.ShapeDtypeStruct((B, OHW, Cp), jnp.bfloat16),
        grid=(B,),
        in_specs=[
            pl.BlockSpec((None, HinOW, Kf), lambda bi: (bi, 0, 0)),
            pl.BlockSpec((TKH, Kf, Cp), lambda bi: (0, 0, 0)),
            pl.BlockSpec((1, Cp), lambda bi: (0, 0)),
            pl.BlockSpec((1, Cp), lambda bi: (0, 0)),
        ],
        out_specs=pl.BlockSpec((None, OHW, Cp), lambda bi: (bi, 0, 0)),
        scratch_shapes=[pltpu.VMEM((OHW, Cp), jnp.float32)],
        compiler_params=pltpu.CompilerParams(
            dimension_semantics=("parallel",),
            vmem_limit_bytes=vmem_limit),
    )(x2d, w, gamma, beta)


# ---------------------------------------------------------------------------
# Glue (pure data rearrangement; fuses into one XLA pass per layer).
# ---------------------------------------------------------------------------
def _reflect_pad(x):
    return jnp.pad(x, ((0, 0), (PAD, PAD), (PAD, PAD), (0, 0)), mode="reflect")


def _space_to_depth2(x):
    # (B, H, W, C) -> (B, H//2, W//2, 4*C); new channel index = (p*2+q)*C + c
    # where (p, q) is the position inside each 2x2 block.
    B, H, W, C = x.shape
    x = x.reshape(B, H // 2, 2, W // 2, 2, C)
    x = jnp.transpose(x, (0, 1, 3, 2, 4, 5))
    return x.reshape(B, H // 2, W // 2, 4 * C)


def _fold_width_taps(xp, tkw):
    # Fold the horizontal conv taps into the channel axis:
    # out[h, ow, kj*C + c] = xp[h, ow + kj, c]  for ow in [0, Win - tkw + 1).
    ow = xp.shape[2] - tkw + 1
    return jnp.concatenate([xp[:, :, kj:kj + ow, :] for kj in range(tkw)], axis=-1)


def _convblock_apply(h, layer):
    # h: (B, H, W, Cin) bf16 NHWC  ->  (B, OH, OW, Cout) bf16 NHWC
    xp = _reflect_pad(h)
    if layer["stride"] == 2:
        # k=4 / stride-2 conv  ==  k=2 / stride-1 conv on the s2d input.
        assert xp.shape[1] % 2 == 0 and xp.shape[2] % 2 == 0, "even spatial required"
        xp = _space_to_depth2(xp)
        tk = 2
    else:
        tk = 4
    xf = _fold_width_taps(xp, tk)                   # (B, Hin, OW, tk*Kc)
    B, Hin, OW, Kf = xf.shape
    OH = Hin - tk + 1
    xf = xf.astype(jnp.bfloat16).reshape(B, Hin * OW, Kf)
    R = _pick_row_block(OH, OW)
    out = _convblock_pallas(xf, layer["w"], layer["gamma"], layer["beta"],
                            OH, OW, tk, R)
    out = out.reshape(B, OH, OW, -1)[..., :layer["cout"]]   # drop lane padding
    return out


def discriminator_forward(x_nchw, y_nchw, layers):
    h = jnp.concatenate([x_nchw, y_nchw], axis=1)   # NCHW channel concat
    h = jnp.transpose(h, (0, 2, 3, 1))              # -> NHWC for the kernels
    h = h.astype(jnp.bfloat16)
    for layer in layers:
        h = _convblock_apply(h, layer)
    out = jnp.transpose(h, (0, 3, 1, 2))            # back to NCHW
    return out.astype(jnp.float32)


# ---------------------------------------------------------------------------
# Parameters (PyTorch-layout weights, packed for the kernel).
# ---------------------------------------------------------------------------
def _pack_conv_weight(w_oihw, stride, cp):
    # w_oihw: (Cout, Cin, KH, KW) -- PyTorch Conv2d layout (real checkpoints
    # drop in here unchanged).  Output: (TKH, TKW*Kc, Cp) with the horizontal
    # taps (and, for stride 2, the 2x2 space-to-depth phase) folded into K.
    cout, cin = w_oihw.shape[:2]
    w = jnp.transpose(w_oihw, (2, 3, 1, 0))          # (KH, KW, Cin, Cout)
    if stride == 2:
        # ki = 2a+p, kj = 2b+q; s2d channel = (p*2+q)*Cin + c
        w = w.reshape(2, 2, 2, 2, cin, cout)         # (a, p, b, q, c, o)
        w = jnp.transpose(w, (0, 2, 1, 3, 4, 5))     # (a, b, p, q, c, o)
        w = w.reshape(2, 2, 4 * cin, cout)           # (a, b, s2d-chan, o)
        tkh = 2
    else:
        w = w.reshape(4, 4, cin, cout)               # (ki, kj, c, o)
        tkh = 4
    w = w.reshape(tkh, w.shape[1] * w.shape[2], cout)   # fold kj into K
    w = jnp.pad(w, ((0, 0), (0, 0), (0, cp - cout)))
    return w.astype(jnp.bfloat16)


def init_params(key, in_channels, features, stride=2):
    depth = len(features)
    chs = [in_channels * 2] + list(features) + [1]
    strides = [stride if i < depth - 1 else 1 for i in range(depth)] + [1]
    layers = []
    for i in range(len(chs) - 1):
        cin, cout = chs[i], chs[i + 1]
        s = strides[i]
        key, k1, k2, k3 = jax.random.split(key, 4)
        fan_in = cin * KH * KW
        w_oihw = (jax.random.normal(k1, (cout, cin, KH, KW), jnp.float32)
                  / jnp.sqrt(float(fan_in)))
        gamma = 1.0 + 0.05 * jax.random.normal(k2, (cout,), jnp.float32)
        beta = 0.05 * jax.random.normal(k3, (cout,), jnp.float32)
        cp = _round_up(cout, LANE)
        layers.append(dict(
            stride=s,
            cout=cout,
            w=_pack_conv_weight(w_oihw, s, cp),
            gamma=jnp.pad(gamma, (0, cp - cout)).reshape(1, cp),
            beta=jnp.pad(beta, (0, cp - cout)).reshape(1, cp),
            # NOTE: the PyTorch Conv2d bias is omitted on purpose: every
            # ConvBlock in this module applies InstanceNorm, whose mean
            # subtraction removes a per-channel shift exactly.
        ))
    return layers


if __name__ == "__main__":
    key = jax.random.PRNGKey(0)
    kx, ky, kp = jax.random.split(key, 3)

    # Small shapes consistent with the module (spatial must survive 3x stride-2
    # + 2x stride-1 k=4 convs): 32 -> 16 -> 8 -> 4 -> 3 -> 2.
    B, IC, H, W = 2, 3, 32, 32
    features = [8, 16, 32, 64]

    x = jax.random.normal(kx, (B, IC, H, W), jnp.float32)
    y = jax.random.normal(ky, (B, IC, H, W), jnp.float32)
    layers = init_params(kp, IC, features)

    out = discriminator_forward(x, y, layers)
    out = jax.block_until_ready(out)
    assert out.shape == (B, 1, 2, 2), f"unexpected output shape {out.shape}"
    assert bool(jnp.all(jnp.isfinite(out)))
    print("KERNEL_OK")
</pallas_src>

<mosaic_0001>
module attributes {stable_mosaic.version = 11 : i64} {
  func.func @kernel(%arg0: i32, %arg1: memref<1x272x48xbf16, #tpu.memory_space<vmem>>, %arg2: memref<2x48x128xbf16, #tpu.memory_space<vmem>>, %arg3: memref<1x128xf32, #tpu.memory_space<vmem>>, %arg4: memref<1x128xf32, #tpu.memory_space<vmem>>, %arg5: memref<1x256x128xbf16, #tpu.memory_space<vmem>>, %arg6: memref<256x128xf32, #tpu.memory_space<vmem>>) attributes {dimension_semantics = [#tpu.dimension_semantics<parallel>], iteration_bounds = array<i64: 2>, scalar_prefetch = 0 : i64, scratch_operands = 1 : i64, tpu.core_type = #tpu.core_type<tc>, window_params = [{transform_indices = @transform_0, window_bounds = array<i64: 1, 272, 48>}, {pipeline_mode = #tpu.pipeline_mode<synchronous>, transform_indices = @transform_1, window_bounds = array<i64: 2, 48, 128>}, {pipeline_mode = #tpu.pipeline_mode<synchronous>, transform_indices = @transform_2, window_bounds = array<i64: 1, 128>}, {pipeline_mode = #tpu.pipeline_mode<synchronous>, transform_indices = @transform_3, window_bounds = array<i64: 1, 128>}, {transform_indices = @transform_4, window_bounds = array<i64: 1, 256, 128>}]} {
    %cst = arith.constant 0.000000e+00 : f32
    %0 = vector.broadcast %cst : f32 to vector<1x128xf32>
    %cst_0 = arith.constant 0.000000e+00 : f32
    %1 = vector.broadcast %cst_0 : f32 to vector<1x128xf32>
    %c0 = arith.constant 0 : index
    %c0_1 = arith.constant 0 : index
    %c0_2 = arith.constant 0 : index
    %2 = vector.load %arg1[%c0, %c0_1, %c0_2] : memref<1x272x48xbf16, #tpu.memory_space<vmem>>, vector<1x256x48xbf16>
    %3 = vector.shape_cast %2 : vector<1x256x48xbf16> to vector<256x48xbf16>
    %c0_3 = arith.constant 0 : index
    %c0_4 = arith.constant 0 : index
    %c0_5 = arith.constant 0 : index
    %4 = vector.load %arg2[%c0_3, %c0_4, %c0_5] : memref<2x48x128xbf16, #tpu.memory_space<vmem>>, vector<1x48x128xbf16>
    %5 = vector.shape_cast %4 : vector<1x48x128xbf16> to vector<48x128xbf16>
    %cst_6 = arith.constant dense<0.000000e+00> : vector<256x128xf32>
    %6 = tpu.matmul %3, %5, %cst_6 {dimension_numbers = #tpu.dot_dimension_numbers<[1], [0], [0], [1], [0, 0, 1, 1], [], []>} : vector<256x48xbf16>, vector<48x128xbf16>, vector<256x128xf32> -> vector<256x128xf32>
    %c0_7 = arith.constant 0 : index
    %c0_8 = arith.constant 0 : index
    %7 = vector.load %arg6[%c0_7, %c0_8] : memref<256x128xf32, #tpu.memory_space<vmem>>, vector<256x128xf32>
    tpu.vector_store %arg6[%c0_7, %c0_8], %6 {strides = array<i32>} : memref<256x128xf32, #tpu.memory_space<vmem>>, vector<256x128xf32>,
    %c0_9 = arith.constant 0 : index
    %c0_10 = arith.constant 0 : index
    %8 = vector.load %arg6[%c0_9, %c0_10] : memref<256x128xf32, #tpu.memory_space<vmem>>, vector<256x128xf32>
    %c0_11 = arith.constant 0 : index
    %c16 = arith.constant 16 : index
    %c0_12 = arith.constant 0 : index
    %9 = vector.load %arg1[%c0_11, %c16, %c0_12] : memref<1x272x48xbf16, #tpu.memory_space<vmem>>, vector<1x256x48xbf16>
    %10 = vector.shape_cast %9 : vector<1x256x48xbf16> to vector<256x48xbf16>
    %c1 = arith.constant 1 : index
    %c0_13 = arith.constant 0 : index
    %c0_14 = arith.constant 0 : index
    %11 = vector.load %arg2[%c1, %c0_13, %c0_14] : memref<2x48x128xbf16, #tpu.memory_space<vmem>>, vector<1x48x128xbf16>
    %12 = vector.shape_cast %11 : vector<1x48x128xbf16> to vector<48x128xbf16>
    %cst_15 = arith.constant dense<0.000000e+00> : vector<256x128xf32>
    %13 = tpu.matmul %10, %12, %cst_15 {dimension_numbers = #tpu.dot_dimension_numbers<[1], [0], [0], [1], [0, 0, 1, 1], [], []>} : vector<256x48xbf16>, vector<48x128xbf16>, vector<256x128xf32> -> vector<256x128xf32>
    %14 = arith.addf %8, %13 : vector<256x128xf32>
    %c0_16 = arith.constant 0 : index
    %c0_17 = arith.constant 0 : index
    %15 = vector.load %arg6[%c0_16, %c0_17] : memref<256x128xf32, #tpu.memory_space<vmem>>, vector<256x128xf32>
    tpu.vector_store %arg6[%c0_16, %c0_17], %14 {strides = array<i32>} : memref<256x128xf32, #tpu.memory_space<vmem>>, vector<256x128xf32>,
    %c0_18 = arith.constant 0 : index
    %c0_19 = arith.constant 0 : index
    %16 = vector.load %arg6[%c0_18, %c0_19] : memref<256x128xf32, #tpu.memory_space<vmem>>, vector<256x128xf32>
    %cst_20 = arith.constant dense<0.000000e+00> : vector<128xf32>
    %17 = vector.multi_reduction <add>, %16, %cst_20 [0] : vector<256x128xf32> to vector<128xf32>
    %18 = vector.shape_cast %17 : vector<128xf32> to vector<1x128xf32>
    %19 = arith.addf %0, %18 : vector<1x128xf32>
    %20 = arith.mulf %16, %16 : vector<256x128xf32>
    %cst_21 = arith.constant dense<0.000000e+00> : vector<128xf32>
    %21 = vector.multi_reduction <add>, %20, %cst_21 [0] : vector<256x128xf32> to vector<128xf32>
    %22 = vector.shape_cast %21 : vector<128xf32> to vector<1x128xf32>
    %23 = arith.addf %1, %22 : vector<1x128xf32>
    %cst_22 = arith.constant 3.906250e-03 : f32
    %24 = vector.broadcast %cst_22 : f32 to vector<1x128xf32>
    %25 = arith.mulf %19, %24 : vector<1x128xf32>
    %cst_23 = arith.constant 3.906250e-03 : f32
    %26 = vector.broadcast %cst_23 : f32 to vector<1x128xf32>
    %27 = arith.mulf %23, %26 : vector<1x128xf32>
    %28 = arith.mulf %25, %25 : vector<1x128xf32>
    %29 = arith.subf %27, %28 : vector<1x128xf32>
    %cst_24 = arith.constant 0.000000e+00 : f32
    %30 = vector.broadcast %cst_24 : f32 to vector<1x128xf32>
    %31 = arith.maximumf %29, %30 : vector<1x128xf32>
    %cst_25 = arith.constant 9.99999974E-6 : f32
    %32 = vector.broadcast %cst_25 : f32 to vector<1x128xf32>
    %33 = arith.addf %31, %32 : vector<1x128xf32>
    %34 = math.rsqrt %33 : vector<1x128xf32>
    %c0_26 = arith.constant 0 : index
    %c0_27 = arith.constant 0 : index
    %35 = vector.load %arg3[%c0_26, %c0_27] : memref<1x128xf32, #tpu.memory_space<vmem>>, vector<1x128xf32>
    %36 = arith.mulf %35, %34 : vector<1x128xf32>
    %c0_28 = arith.constant 0 : index
    %c0_29 = arith.constant 0 : index
    %37 = vector.load %arg4[%c0_28, %c0_29] : memref<1x128xf32, #tpu.memory_space<vmem>>, vector<1x128xf32>
    %38 = arith.mulf %25, %36 : vector<1x128xf32>
    %39 = arith.subf %37, %38 : vector<1x128xf32>
    %c0_30 = arith.constant 0 : index
    %c0_31 = arith.constant 0 : index
    %40 = vector.load %arg6[%c0_30, %c0_31] : memref<256x128xf32, #tpu.memory_space<vmem>>, vector<256x128xf32>
    %41 = vector.broadcast %36 : vector<1x128xf32> to vector<256x128xf32>
    %42 = arith.mulf %40, %41 : vector<256x128xf32>
    %43 = vector.broadcast %39 : vector<1x128xf32> to vector<256x128xf32>
    %44 = arith.addf %42, %43 : vector<256x128xf32>
    %cst_32 = arith.constant 0.000000e+00 : f32
    %45 = vector.broadcast %cst_32 : f32 to vector<256x128xf32>
    %46 = arith.cmpf oge, %44, %45 : vector<256x128xf32>
    %cst_33 = arith.constant 2.000000e-01 : f32
    %47 = vector.broadcast %cst_33 : f32 to vector<256x128xf32>
    %48 = arith.mulf %47, %44 : vector<256x128xf32>
    %49 = arith.select %46, %44, %48 : vector<256x128xi1>, vector<256x128xf32>
    %50 = arith.truncf %49 : vector<256x128xf32> to vector<256x128xbf16>
    %c0_34 = arith.constant 0 : index
    %c0_35 = arith.constant 0 : index
    %c0_36 = arith.constant 0 : index
    %51 = vector.load %arg5[%c0_34, %c0_35, %c0_36] : memref<1x256x128xbf16, #tpu.memory_space<vmem>>, vector<1x256x128xbf16>
    %52 = vector.shape_cast %51 : vector<1x256x128xbf16> to vector<256x128xbf16>
    %53 = vector.shape_cast %50 : vector<256x128xbf16> to vector<1x256x128xbf16>
    tpu.vector_store %arg5[%c0_34, %c0_35, %c0_36], %53 {strides = array<i32>} : memref<1x256x128xbf16, #tpu.memory_space<vmem>>, vector<1x256x128xbf16>,
    return
  }
  func.func @transform_0(%arg0: i32) -> (i32, i32, i32) {
    %c0_i32 = arith.constant 0 : i32
    %c0_i32_0 = arith.constant 0 : i32
    %c0_i32_1 = arith.constant 0 : i32
    return %arg0, %c0_i32, %c0_i32_0 : i32, i32, i32
  }
  func.func @transform_1(%arg0: i32) -> (i32, i32, i32) {
    %c0_i32 = arith.constant 0 : i32
    %c0_i32_0 = arith.constant 0 : i32
    %c0_i32_1 = arith.constant 0 : i32
    %c0_i32_2 = arith.constant 0 : i32
    return %c0_i32, %c0_i32_0, %c0_i32_1 : i32, i32, i32
  }
  func.func @transform_2(%arg0: i32) -> (i32, i32) {
    %c0_i32 = arith.constant 0 : i32
    %c0_i32_0 = arith.constant 0 : i32
    %c0_i32_1 = arith.constant 0 : i32
    return %c0_i32, %c0_i32_0 : i32, i32
  }
  func.func @transform_3(%arg0: i32) -> (i32, i32) {
    %c0_i32 = arith.constant 0 : i32
    %c0_i32_0 = arith.constant 0 : i32
    %c0_i32_1 = arith.constant 0 : i32
    return %c0_i32, %c0_i32_0 : i32, i32
  }
  func.func @transform_4(%arg0: i32) -> (i32, i32, i32) {
    %c0_i32 = arith.constant 0 : i32
    %c0_i32_0 = arith.constant 0 : i32
    %c0_i32_1 = arith.constant 0 : i32
    return %arg0, %c0_i32, %c0_i32_0 : i32, i32, i32
  }
}

</mosaic_0001>

<llo_original>
// kernel: tpu_custom_call.1
$region0: #{tpu_custom_call.1}
  #allocation0 [shape = 'u32[]', space=smem, size = 0x4, offset = 0x4, fixed_abs, tag = 'smem constant byte address 0x4 - core index']
  #allocation1 [shape = 'u32[144,128]{1,0:T(1,128)}', space=vmem, size = 0x12000, scoped, tag = 'internal scratch']
  #allocation2 [shape = 'f32[256,128]{1,0:T(8,128)}', space=vmem, size = 0x20000, scoped, tag = 'scratch operand']
  %s0 = inlined_call_operand.vmem [shape: bf16[2,272,48], index: 0, kind: input, shape index: {}]
  %s1 = inlined_call_operand.vmem [shape: bf16[2,48,128], index: 1, kind: input, shape index: {}]
  %s2 = inlined_call_operand.vmem [shape: f32[1,128], index: 2, kind: input, shape index: {}]
  %s3 = inlined_call_operand.vmem [shape: f32[1,128], index: 3, kind: input, shape index: {}]
  %s4 = inlined_call_operand.hbm [shape: bf16[2,256,128], index: 4, kind: output, shape index: {}]
  %s5 = sld [smem:[#allocation0]]
  $region49: #{tpu_custom_call.1} parent=0
    _
  %s7 = ssub.s32 1, %s5
  %s8 = scalar_select 0, %s7, %s5
  $region1: #{tpu_custom_call.1} parent=0
    #allocation3 [shape = 'u8[131072]{0}', space=vmem, size = 0x20000, scoped, tag = 'output window, operand 0']
    #allocation4 [shape = 's32[2]{0}', space=sflag, size = 0x8, scoped, tag = 'scoped memory for tpu_custom_call.1']
    %9 = vsyncpa [#allocation4], 0
    %s10 = scalar_lea.sflag [#allocation4], 1
    %11 = vsyncpa %s10, 0
    loop: start=0, step=1, limit=4
    $region2: #{tpu_custom_call.1} parent=1 // loop_pre_header
      _
    $region3: #{tpu_custom_call.1} parent=1 // loop_header
      %s13 = sphi 0, %s17
      %p14 = scmp.ge.s32.totalorder %s13, 4
      %s23 = sphi 0, %s25
      %s26 = sphi 0, %s23
      %s27 = sphi 0, %s26
      %s43 = sphi 0, %s27
      %s47 = sphi 0, %s47
      %s49 = sphi 0, %s47
      %s50 = sphi 0, %s49
      %s64 = sphi 0, %s50
      %s68 = sphi 0, %s68
      %s70 = sphi 0, %s68
      %s71 = sphi 0, %s70
      %s85 = sphi 0, %s71
      %s89 = sphi 0, %s89
      %s91 = sphi 0, %s89
      %s92 = sphi 0, %s91
      %s106 = sphi 0, %s92
      %s112 = sphi 0, %s114
      %s115 = sphi 0, %s112
      %s116 = sphi 0, %s115
      %s132 = sphi 0, %s116
    $region4: #{tpu_custom_call.1} parent=1 // loop_header_branch
      %16 = sbr.rel (%p14) target = $region8
    $region5: #{tpu_custom_call.1} parent=1 // loop_body
      %s18 = ssub.s32 %s13, 1
      %s19 = ssub.s32 %s13, 2
      %s20 = sadd.s32 %s13, 1
      %s21 = ssub.s32 %s13, %s20
      %p22 = scmp.eq.s32.totalorder %s21, 0
      %s24 = sadd.s32 %s23, 1
      %s25 = scalar_select %p22, %s23, %s24
      %p28 = pneg %p22
      %p29 = scmp.eq.s32.totalorder %s13, 1
      %p30 = por %p28, %p29
      %p31 = scmp.ne.s32.totalorder %s23, %s26
      %p32 = scmp.eq.s32.totalorder %s13, 0
      %p33 = por %p31, %p32
      %p34 = scmp.ne.s32.totalorder %s23, %s26
      %p35 = scmp.eq.s32.totalorder %s18, 1
      %p36 = por %p34, %p35
      %p37 = scmp.ne.s32.totalorder %s26, %s27
      %p38 = scmp.eq.s32.totalorder %s18, 0
      %p39 = por %p37, %p38
      %p40 = scmp.ne.s32.totalorder %s26, %s27
      %p41 = scmp.eq.s32.totalorder %s19, 1
      %p42 = por %p40, %p41
      %p44 = scmp.ne.s32.totalorder %s27, %s43
      %p45 = scmp.eq.s32.totalorder %s19, 0
      %p46 = por %p44, %p45
      %s48 = sadd.s32 %s47, 1
      %p51 = scmp.eq.s32.totalorder %s13, 1
      %p52 = scmp.ne.s32.totalorder %s47, %s49
      %p53 = scmp.eq.s32.totalorder %s13, 0
      %p54 = por %p52, %p53
      %p55 = scmp.ne.s32.totalorder %s47, %s49
      %p56 = scmp.eq.s32.totalorder %s18, 1
      %p57 = por %p55, %p56
      %p58 = scmp.ne.s32.totalorder %s49, %s50
      %p59 = scmp.eq.s32.totalorder %s18, 0
      %p60 = por %p58, %p59
      %p61 = scmp.ne.s32.totalorder %s49, %s50
      %p62 = scmp.eq.s32.totalorder %s19, 1
      %p63 = por %p61, %p62
      %p65 = scmp.ne.s32.totalorder %s50, %s64
      %p66 = scmp.eq.s32.totalorder %s19, 0
      %p67 = por %p65, %p66
      %s69 = sadd.s32 %s68, 1
      %p72 = scmp.eq.s32.totalorder %s13, 1
      %p73 = scmp.ne.s32.totalorder %s68, %s70
      %p74 = scmp.eq.s32.totalorder %s13, 0
      %p75 = por %p73, %p74
      %p76 = scmp.ne.s32.totalorder %s68, %s70
      %p77 = scmp.eq.s32.totalorder %s18, 1
      %p78 = por %p76, %p77
      %p79 = scmp.ne.s32.totalorder %s70, %s71
      %p80 = scmp.eq.s32.totalorder %s18, 0
      %p81 = por %p79, %p80
      %p82 = scmp.ne.s32.totalorder %s70, %s71
      %p83 = scmp.eq.s32.totalorder %s19, 1
      %p84 = por %p82, %p83
      %p86 = scmp.ne.s32.totalorder %s71, %s85
      %p87 = scmp.eq.s32.totalorder %s19, 0
      %p88 = por %p86, %p87
      %s90 = sadd.s32 %s89, 1
      %p93 = scmp.eq.s32.totalorder %s13, 1
      %p94 = scmp.ne.s32.totalorder %s89, %s91
      %p95 = scmp.eq.s32.totalorder %s13, 0
      %p96 = por %p94, %p95
      %p97 = scmp.ne.s32.totalorder %s89, %s91
      %p98 = scmp.eq.s32.totalorder %s18, 1
      %p99 = por %p97, %p98
      %p100 = scmp.ne.s32.totalorder %s91, %s92
      %p101 = scmp.eq.s32.totalorder %s18, 0
      %p102 = por %p100, %p101
      %p103 = scmp.ne.s32.totalorder %s91, %s92
      %p104 = scmp.eq.s32.totalorder %s19, 1
      %p105 = por %p103, %p104
      %p107 = scmp.ne.s32.totalorder %s92, %s106
      %p108 = scmp.eq.s32.totalorder %s19, 0
      %p109 = por %p107, %p108
      %s110 = ssub.s32 %s13, %s20
      %p111 = scmp.eq.s32.totalorder %s110, 0
      %s113 = sadd.s32 %s112, 1
      %s114 = scalar_select %p111, %s112, %s113
      %p117 = pneg %p111
      %p118 = scmp.eq.s32.totalorder %s13, 1
      %p119 = por %p117, %p118
      %p120 = scmp.ne.s32.totalorder %s112, %s115
      %p121 = scmp.eq.s32.totalorder %s13, 0
      %p122 = por %p120, %p121
      %p123 = scmp.ne.s32.totalorder %s112, %s115
      %p124 = scmp.eq.s32.totalorder %s18, 1
      %p125 = por %p123, %p124
      %p126 = scmp.ne.s32.totalorder %s115, %s116
      %p127 = scmp.eq.s32.totalorder %s18, 0
      %p128 = por %p126, %p127
      %p129 = scmp.ne.s32.totalorder %s115, %s116
      %p130 = scmp.eq.s32.totalorder %s19, 1
      %p131 = por %p129, %p130
      %p133 = scmp.ne.s32.totalorder %s116, %s132
      %p134 = scmp.eq.s32.totalorder %s19, 0
      %p135 = por %p133, %p134
      %p136 = scmp.le.s32.totalorder 1, %s13
      %p137 = scmp.lt.s32.totalorder %s13, 3
      %p138 = pnand %p136, %p137
      %p139 = pneg %p138
      // Predicated region
      $region9: #{tpu_custom_call.1} parent=5 // pred_check
        _
      $region10: #{tpu_custom_call.1} parent=5 // pred_check_branch
        %141 = sbr.rel (%p138) target = $region12
      $region11: #{tpu_custom_call.1} parent=5 // pred_region
        %s142 = ssub.s32 %s13, 1
        // Predicated region
        $region13: #{tpu_custom_call.1} parent=11 // pred_check
          %p143 = pneg %p60
        $region14: #{tpu_custom_call.1} parent=11 // pred_check_branch
          %145 = sbr.rel (%p143) target = $region16
        $region15: #{tpu_custom_call.1} parent=11 // pred_region
          _
        $region16: #{tpu_custom_call.1} parent=11 // pred_fallthru
          _
        // Predicated region
        $region17: #{tpu_custom_call.1} parent=11 // pred_check
          %p146 = pneg %p81
        $region18: #{tpu_custom_call.1} parent=11 // pred_check_branch
          %148 = sbr.rel (%p146) target = $region20
        $region19: #{tpu_custom_call.1} parent=11 // pred_region
          _
        $region20: #{tpu_custom_call.1} parent=11 // pred_fallthru
          _
        // Predicated region
        $region21: #{tpu_custom_call.1} parent=11 // pred_check
          %p149 = pneg %p102
        $region22: #{tpu_custom_call.1} parent=11 // pred_check_branch
          %151 = sbr.rel (%p149) target = $region24
        $region23: #{tpu_custom_call.1} parent=11 // pred_region
          _
        $region24: #{tpu_custom_call.1} parent=11 // pred_fallthru
          _
      $region12: #{tpu_custom_call.1} parent=5 // pred_fallthru
        _
      %p152 = scmp.lt.s32.totalorder %s13, 2
      // Predicated region
      $region25: #{tpu_custom_call.1} parent=5 // pred_check
        %p153 = pneg %p152
      $region26: #{tpu_custom_call.1} parent=5 // pred_check_branch
        %155 = sbr.rel (%p153) target = $region28
      $region27: #{tpu_custom_call.1} parent=5 // pred_region
        // Predicated region
        $region29: #{tpu_custom_call.1} parent=27 // pred_check
          %p156 = pneg %p33
        $region30: #{tpu_custom_call.1} parent=27 // pred_check_branch
          %158 = sbr.rel (%p156) target = $region32
        $region31: #{tpu_custom_call.1} parent=27 // pred_region
          %p159 = scmp.lt.s32.totalorder %s13, 1
          %s160 = scalar_select %p159, %s13, 1
          %s161 = smul.addr %s160, 34
          %s162 = smul.addr %s161, 4
          %s163 = scalar_lea.vmem %s0, %s162
        $region32: #{tpu_custom_call.1} parent=27 // pred_fallthru
          _
      $region28: #{tpu_custom_call.1} parent=5 // pred_fallthru
        _
      %p164 = scmp.le.s32.totalorder 1, %s13
      %p165 = scmp.lt.s32.totalorder %s13, 3
      %p166 = pnand %p164, %p165
      %p167 = pneg %p166
      // Predicated region
      $region33: #{tpu_custom_call.1} parent=5 // pred_check
        _
      $region34: #{tpu_custom_call.1} parent=5 // pred_check_branch
        %169 = sbr.rel (%p166) target = $region36
      $region35: #{tpu_custom_call.1} parent=5 // pred_region
        %s170 = ssub.s32 %s13, 1
        %p171 = scmp.lt.s32.totalorder %s18, 1
        %s172 = scalar_select %p171, %s18, 1
        %s173 = smul.addr %s172, 34
        %s174 = smul.addr %s173, 4
        %s175 = scalar_lea.vmem %s0, %s174
        %p176 = pneg %p39
        %p177 = pneg %p36
        %p178 = pneg %p60
        %p179 = pneg %p57
        %p180 = pneg %p81
        %p181 = pneg %p78
        %p182 = pneg %p102
        %p183 = pneg %p99
        %p184 = pneg %p128
        %p185 = pneg %p125
        %s186 = sand.u32 %s115, 1
        %s187 = scalar_lea.sflag [#allocation4], %s186
        %s188 = sand.u32 %s115, 1
        %s189 = smul.addr %s188, 128
        %s190 = scalar_lea.vmem [#allocation3], %s189
        %p191 = scmp.lt.s32.totalorder %s18, 1
        %s192 = scalar_select %p191, %s18, 1
        %s193 = smul.addr %s192, 34
        %s194 = smul.addr %s193, 4
        %s195 = scalar_lea.vmem %s0, %s194
        %v197 = vld [vmem:[%s195] sm:$0xf]
        %v198 = vld [vmem:[%s195 + $0x4] sm:$0xf]
        %v199 = vld [vmem:[%s195 + $0x8] sm:$0xf]
        %v200 = vld [vmem:[%s195 + $0xc] sm:$0xf]
        %v201 = vld [vmem:[%s195 + $0x10] sm:$0xf]
        %v202 = vld [vmem:[%s195 + $0x14] sm:$0xf]
        %v203 = vld [vmem:[%s195 + $0x18] sm:$0xf]
        %v204 = vld [vmem:[%s195 + $0x1c] sm:$0xf]
        %v205 = vld [vmem:[%s195 + $0x20] sm:$0xf]
        %v206 = vld [vmem:[%s195 + $0x24] sm:$0xf]
        %v207 = vld [vmem:[%s195 + $0x28] sm:$0xf]
        %v208 = vld [vmem:[%s195 + $0x2c] sm:$0xf]
        %v209 = vld [vmem:[%s195 + $0x30] sm:$0xf]
        %v210 = vld [vmem:[%s195 + $0x34] sm:$0xf]
        %v211 = vld [vmem:[%s195 + $0x38] sm:$0xf]
        %v212 = vld [vmem:[%s195 + $0x3c] sm:$0xf]
        %v213 = vld [vmem:[%s195 + $0x40] sm:$0xf]
        %v214 = vld [vmem:[%s195 + $0x44] sm:$0xf]
        %v215 = vld [vmem:[%s195 + $0x48] sm:$0xf]
        %v216 = vld [vmem:[%s195 + $0x4c] sm:$0xf]
        %v217 = vld [vmem:[%s195 + $0x50] sm:$0xf]
        %v218 = vld [vmem:[%s195 + $0x54] sm:$0xf]
        %v219 = vld [vmem:[%s195 + $0x58] sm:$0xf]
        %v220 = vld [vmem:[%s195 + $0x5c] sm:$0xf]
        %v221 = vld [vmem:[%s195 + $0x60] sm:$0xf]
        %v222 = vld [vmem:[%s195 + $0x64] sm:$0xf]
        %v223 = vld [vmem:[%s195 + $0x68] sm:$0xf]
        %v224 = vld [vmem:[%s195 + $0x6c] sm:$0xf]
        %v225 = vld [vmem:[%s195 + $0x70] sm:$0xf]
        %v226 = vld [vmem:[%s195 + $0x74] sm:$0xf]
        %v227 = vld [vmem:[%s195 + $0x78] sm:$0xf]
        %v228 = vld [vmem:[%s195 + $0x7c] sm:$0xf]
        %v229 = vld [vmem:[%s1] sm:$0xf]
        %v230 = vld [vmem:[%s1 + $0x4] sm:$0xf]
        %v231 = vld [vmem:[%s1 + $0x8] sm:$0xf]
        %v232 = vld [vmem:[%s1 + $0xc] sm:$0xf]
        %v233 = vld [vmem:[%s1 + $0x10] sm:$0xf]
        %v234 = vld [vmem:[%s1 + $0x14] sm:$0xf]
        %v267 = vunpack.c.l.b16 %v197
        %v268 = vunpack.c.l.b16 %v198
        %v269 = vunpack.c.l.b16 %v199
        %v270 = vunpack.c.l.b16 %v200
        %v271 = vunpack.c.l.b16 %v201
        %v272 = vunpack.c.l.b16 %v202
        %v273 = vunpack.c.l.b16 %v203
        %v274 = vunpack.c.l.b16 %v204
        %v275 = vunpack.c.l.b16 %v205
        %v276 = vunpack.c.l.b16 %v206
        %v277 = vunpack.c.l.b16 %v207
        %v278 = vunpack.c.l.b16 %v208
        %v279 = vunpack.c.l.b16 %v209
        %v280 = vunpack.c.l.b16 %v210
        %v281 = vunpack.c.l.b16 %v211
        %v282 = vunpack.c.l.b16 %v212
        %v283 = vunpack.c.l.b16 %v213
        %v284 = vunpack.c.l.b16 %v214
        %v285 = vunpack.c.l.b16 %v215
        %v286 = vunpack.c.l.b16 %v216
        %v287 = vunpack.c.l.b16 %v217
        %v288 = vunpack.c.l.b16 %v218
        %v289 = vunpack.c.l.b16 %v219
        %v290 = vunpack.c.l.b16 %v220
        %v291 = vunpack.c.l.b16 %v221
        %v292 = vunpack.c.l.b16 %v222
        %v293 = vunpack.c.l.b16 %v223
        %v294 = vunpack.c.l.b16 %v224
        %v295 = vunpack.c.l.b16 %v225
        %v296 = vunpack.c.l.b16 %v226
        %v297 = vunpack.c.l.b16 %v227
        %v298 = vunpack.c.l.b16 %v228
        %v299 = vpack.c.b16 %v268, %v267
        %v300 = vpack.c.b16 %v270, %v269
        %v301 = vpack.c.b16 %v272, %v271
        %v302 = vpack.c.b16 %v274, %v273
        %v303 = vpack.c.b16 %v276, %v275
        %v304 = vpack.c.b16 %v278, %v277
        %v305 = vpack.c.b16 %v280, %v279
        %v306 = vpack.c.b16 %v282, %v281
        %v307 = vpack.c.b16 %v284, %v283
        %v308 = vpack.c.b16 %v286, %v285
        %v309 = vpack.c.b16 %v288, %v287
        %v310 = vpack.c.b16 %v290, %v289
        %v311 = vpack.c.b16 %v292, %v291
        %v312 = vpack.c.b16 %v294, %v293
        %v313 = vpack.c.b16 %v296, %v295
        %v314 = vpack.c.b16 %v298, %v297
        %v321 = vunpack.c.l.b16 %v229
        %v322 = vunpack.c.l.b16 %v230
        %v323 = vunpack.c.l.b16 %v231
        %v324 = vunpack.c.l.b16 %v232
        %v325 = vunpack.c.l.b16 %v233
        %v326 = vunpack.c.l.b16 %v234
        %v327 = vpack.c.b16 %v322, %v321
        %v328 = vpack.c.b16 %v324, %v323
        %v329 = vpack.c.b16 %v326, %v325
        %vm333 = vcmask 392192
        %v335 = vsel %vm333, %v299, 0
        %v338 = vsel %vm333, %v300, 0
        %v341 = vsel %vm333, %v301, 0
        %v344 = vsel %vm333, %v302, 0
        %v347 = vsel %vm333, %v303, 0
        %v350 = vsel %vm333, %v304, 0
        %v353 = vsel %vm333, %v305, 0
        %v356 = vsel %vm333, %v306, 0
        %v359 = vsel %vm333, %v307, 0
        %v362 = vsel %vm333, %v308, 0
        %v365 = vsel %vm333, %v309, 0
        %v368 = vsel %vm333, %v310, 0
        %v371 = vsel %vm333, %v311, 0
        %v374 = vsel %vm333, %v312, 0
        %v377 = vsel %vm333, %v313, 0
        %v380 = vsel %vm333, %v314, 0
        %382 = vmatprep.subr.bf16.mxu0 0
        %383 = vmatpush1.bf16.msra.mxu0 0
        %384 = vmatprep.subr.bf16.mxu0 0
        %385 = vmatpush1.bf16.msra.mxu0 0
        %386 = vmatprep.subr.bf16.mxu0 0
        %387 = vmatpush1.bf16.msra.mxu0 0
        %388 = vmatprep.subr.bf16.mxu0 0
        %389 = vmatpush1.bf16.msra.mxu0 0
        %390 = vmatprep.subr.bf16.mxu0 0
        %391 = vmatpush1.bf16.msra.mxu0 0
        %392 = vmatprep.subr.bf16.mxu0 0
        %393 = vmatpush1.bf16.msra.mxu0 %v329
        %394 = vmatprep.subr.bf16.mxu0 0
        %395 = vmatpush1.bf16.msra.mxu0 %v328
        %396 = vmatprep.subr.bf16.mxu0 0
        %397 = vmatpush1.bf16.msra.mxu0 %v327
        %398 = vmatprep.subr.bf16.mxu0 0
        %399 = vmatpush2.bf16.msra.mxu0 0
        %400 = vmatprep.subr.bf16.mxu0 0
        %401 = vmatpush2.bf16.msra.mxu0 0
        %402 = vmatprep.subr.bf16.mxu0 0
        %403 = vmatpush2.bf16.msra.mxu0 0
        %404 = vmatprep.subr.bf16.mxu0 0
        %405 = vmatpush2.bf16.msra.mxu0 0
        %406 = vmatprep.subr.bf16.mxu0 0
        %407 = vmatpush2.bf16.msra.mxu0 0
        %408 = vmatprep.subr.bf16.mxu0 0
        %409 = vmatpush2.bf16.msra.mxu0 0
        %410 = vmatprep.subr.bf16.mxu0 0
        %411 = vmatpush2.bf16.msra.mxu0 0
        %412 = vmatprep.subr.bf16.mxu0 0
        %413 = vmatpush2.bf16.msra.mxu0 0
        %414 = vmatprep.mubr.bf16.mxu0 0
        %415 = vmatmul.mubr.bf16.gmra.mxu0 %v335
        %v416 = vpop.f32.mrf.mxu0
        %v417 = vadd.f32 0.0, %v416
        %v418 = vpop.f32.mrf.mxu0
        %v419 = vpop.f32.mrf.mxu0
        %v420 = vadd.f32 0.0, %v419
        %v421 = vpop.f32.mrf.mxu0
        %422 = vmatprep.mubr.bf16.mxu0 0
        %423 = vmatmul.mubr.bf16.gmra.mxu0 %v338
        %v424 = vpop.f32.mrf.mxu0
        %v425 = vadd.f32 0.0, %v424
        %v426 = vpop.f32.mrf.mxu0
        %v427 = vpop.f32.mrf.mxu0
        %v428 = vadd.f32 0.0, %v427
        %v429 = vpop.f32.mrf.mxu0
        %430 = vmatprep.mubr.bf16.mxu0 0
        %431 = vmatmul.mubr.bf16.gmra.mxu0 %v341
        %v432 = vpop.f32.mrf.mxu0
        %v433 = vadd.f32 0.0, %v432
        %v434 = vpop.f32.mrf.mxu0
        %v435 = vpop.f32.mrf.mxu0
        %v436 = vadd.f32 0.0, %v435
        %v437 = vpop.f32.mrf.mxu0
        %438 = vmatprep.mubr.bf16.mxu0 0
        %439 = vmatmul.mubr.bf16.gmra.mxu0 %v344
        %v440 = vpop.f32.mrf.mxu0
        %v441 = vadd.f32 0.0, %v440
        %v442 = vpop.f32.mrf.mxu0
        %v443 = vpop.f32.mrf.mxu0
        %v444 = vadd.f32 0.0, %v443
        %v445 = vpop.f32.mrf.mxu0
        %446 = vmatprep.mubr.bf16.mxu0 0
        %447 = vmatmul.mubr.bf16.gmra.mxu0 %v347
        %v448 = vpop.f32.mrf.mxu0
        %v449 = vadd.f32 0.0, %v448
        %v450 = vpop.f32.mrf.mxu0
        %v451 = vpop.f32.mrf.mxu0
        %v452 = vadd.f32 0.0, %v451
        %v453 = vpop.f32.mrf.mxu0
        %454 = vmatprep.mubr.bf16.mxu0 0
        %455 = vmatmul.mubr.bf16.gmra.mxu0 %v350
        %v456 = vpop.f32.mrf.mxu0
        %v457 = vadd.f32 0.0, %v456
        %v458 = vpop.f32.mrf.mxu0
        %v459 = vpop.f32.mrf.mxu0
        %v460 = vadd.f32 0.0, %v459
        %v461 = vpop.f32.mrf.mxu0
        %462 = vmatprep.mubr.bf16.mxu0 0
        %463 = vmatmul.mubr.bf16.gmra.mxu0 %v353
        %v464 = vpop.f32.mrf.mxu0
        %v465 = vadd.f32 0.0, %v464
        %v466 = vpop.f32.mrf.mxu0
        %v467 = vpop.f32.mrf.mxu0
        %v468 = vadd.f32 0.0, %v467
        %v469 = vpop.f32.mrf.mxu0
        %470 = vmatprep.mubr.bf16.mxu0 0
        %471 = vmatmul.mubr.bf16.gmra.mxu0 %v356
        %v472 = vpop.f32.mrf.mxu0
        %v473 = vadd.f32 0.0, %v472
        %v474 = vpop.f32.mrf.mxu0
        %v475 = vpop.f32.mrf.mxu0
        %v476 = vadd.f32 0.0, %v475
        %v477 = vpop.f32.mrf.mxu0
        %478 = vmatprep.mubr.bf16.mxu0 0
        %479 = vmatmul.mubr.bf16.gmra.mxu0 %v359
        %v480 = vpop.f32.mrf.mxu0
        %v481 = vadd.f32 0.0, %v480
        %v482 = vpop.f32.mrf.mxu0
        %v483 = vpop.f32.mrf.mxu0
        %v484 = vadd.f32 0.0, %v483
        %v485 = vpop.f32.mrf.mxu0
        %486 = vmatprep.mubr.bf16.mxu0 0
        %487 = vmatmul.mubr.bf16.gmra.mxu0 %v362
        %v488 = vpop.f32.mrf.mxu0
        %v489 = vadd.f32 0.0, %v488
        %v490 = vpop.f32.mrf.mxu0
        %v491 = vpop.f32.mrf.mxu0
        %v492 = vadd.f32 0.0, %v491
        %v493 = vpop.f32.mrf.mxu0
        %494 = vmatprep.mubr.bf16.mxu0 0
        %495 = vmatmul.mubr.bf16.gmra.mxu0 %v365
        %v496 = vpop.f32.mrf.mxu0
        %v497 = vadd.f32 0.0, %v496
        %v498 = vpop.f32.mrf.mxu0
        %v499 = vpop.f32.mrf.mxu0
        %v500 = vadd.f32 0.0, %v499
        %v501 = vpop.f32.mrf.mxu0
        %502 = vmatprep.mubr.bf16.mxu0 0
        %503 = vmatmul.mubr.bf16.gmra.mxu0 %v368
        %v504 = vpop.f32.mrf.mxu0
        %v505 = vadd.f32 0.0, %v504
        %v506 = vpop.f32.mrf.mxu0
        %v507 = vpop.f32.mrf.mxu0
        %v508 = vadd.f32 0.0, %v507
        %v509 = vpop.f32.mrf.mxu0
        %510 = vmatprep.mubr.bf16.mxu0 0
        %511 = vmatmul.mubr.bf16.gmra.mxu0 %v371
        %v512 = vpop.f32.mrf.mxu0
        %v513 = vadd.f32 0.0, %v512
        %v514 = vpop.f32.mrf.mxu0
        %v515 = vpop.f32.mrf.mxu0
        %v516 = vadd.f32 0.0, %v515
        %v517 = vpop.f32.mrf.mxu0
        %518 = vmatprep.mubr.bf16.mxu0 0
        %519 = vmatmul.mubr.bf16.gmra.mxu0 %v374
        %v520 = vpop.f32.mrf.mxu0
        %v521 = vadd.f32 0.0, %v520
        %v522 = vpop.f32.mrf.mxu0
        %v523 = vpop.f32.mrf.mxu0
        %v524 = vadd.f32 0.0, %v523
        %v525 = vpop.f32.mrf.mxu0
        %526 = vmatprep.mubr.bf16.mxu0 0
        %527 = vmatmul.mubr.bf16.gmra.mxu0 %v377
        %v528 = vpop.f32.mrf.mxu0
        %v529 = vadd.f32 0.0, %v528
        %v530 = vpop.f32.mrf.mxu0
        %v531 = vpop.f32.mrf.mxu0
        %v532 = vadd.f32 0.0, %v531
        %v533 = vpop.f32.mrf.mxu0
        %534 = vmatprep.mubr.bf16.mxu0 0
        %535 = vmatmul.mubr.bf16.gmra.mxu0 %v380
        %v536 = vpop.f32.mrf.mxu0
        %v537 = vadd.f32 0.0, %v536
        %v538 = vpop.f32.mrf.mxu0
        %v539 = vpop.f32.mrf.mxu0
        %v540 = vadd.f32 0.0, %v539
        %v541 = vpop.f32.mrf.mxu0
        %542 = vdwg.mxu0
        %543 = vst [vmem:[#allocation2] sm:$0xff] %v417
        %544 = vst [vmem:[#allocation2 + $0x8] sm:$0xff] %v420
        %545 = vst [vmem:[#allocation2 + $0x10] sm:$0xff] %v425
        %546 = vst [vmem:[#allocation2 + $0x18] sm:$0xff] %v428
        %547 = vst [vmem:[#allocation2 + $0x20] sm:$0xff] %v433
        %548 = vst [vmem:[#allocation2 + $0x28] sm:$0xff] %v436
        %549 = vst [vmem:[#allocation2 + $0x30] sm:$0xff] %v441
        %550 = vst [vmem:[#allocation2 + $0x38] sm:$0xff] %v444
        %551 = vst [vmem:[#allocation2 + $0x40] sm:$0xff] %v449
        %552 = vst [vmem:[#allocation2 + $0x48] sm:$0xff] %v452
        %553 = vst [vmem:[#allocation2 + $0x50] sm:$0xff] %v457
        %554 = vst [vmem:[#allocation2 + $0x58] sm:$0xff] %v460
        %555 = vst [vmem:[#allocation2 + $0x60] sm:$0xff] %v465
        %556 = vst [vmem:[#allocation2 + $0x68] sm:$0xff] %v468
        %557 = vst [vmem:[#allocation2 + $0x70] sm:$0xff] %v473
        %558 = vst [vmem:[#allocation2 + $0x78] sm:$0xff] %v476
        %559 = vst [vmem:[#allocation2 + $0x80] sm:$0xff] %v481
        %560 = vst [vmem:[#allocation2 + $0x88] sm:$0xff] %v484
        %561 = vst [vmem:[#allocation2 + $0x90] sm:$0xff] %v489
        %562 = vst [vmem:[#allocation2 + $0x98] sm:$0xff] %v492
        %563 = vst [vmem:[#allocation2 + $0xa0] sm:$0xff] %v497
        %564 = vst [vmem:[#allocation2 + $0xa8] sm:$0xff] %v500
        %565 = vst [vmem:[#allocation2 + $0xb0] sm:$0xff] %v505
        %566 = vst [vmem:[#allocation2 + $0xb8] sm:$0xff] %v508
        %567 = vst [vmem:[#allocation2 + $0xc0] sm:$0xff] %v513
        %568 = vst [vmem:[#allocation2 + $0xc8] sm:$0xff] %v516
        %569 = vst [vmem:[#allocation2 + $0xd0] sm:$0xff] %v521
        %570 = vst [vmem:[#allocation2 + $0xd8] sm:$0xff] %v524
        %571 = vst [vmem:[#allocation2 + $0xe0] sm:$0xff] %v529
        %572 = vst [vmem:[#allocation2 + $0xe8] sm:$0xff] %v532
        %573 = vst [vmem:[#allocation2 + $0xf0] sm:$0xff] %v537
        %574 = vst [vmem:[#allocation2 + $0xf8] sm:$0xff] %v540
        %v575 = vld [vmem:[#allocation2] sm:$0xff]
        %v576 = vld [vmem:[#allocation2 + $0x8] sm:$0xff]
        %v577 = vld [vmem:[#allocation2 + $0x10] sm:$0xff]
        %v578 = vld [vmem:[#allocation2 + $0x18] sm:$0xff]
        %v579 = vld [vmem:[#allocation2 + $0x20] sm:$0xff]
        %v580 = vld [vmem:[#allocation2 + $0x28] sm:$0xff]
        %v581 = vld [vmem:[#allocation2 + $0x30] sm:$0xff]
        %v582 = vld [vmem:[#allocation2 + $0x38] sm:$0xff]
        %v583 = vld [vmem:[#allocation2 + $0x40] sm:$0xff]
        %v584 = vld [vmem:[#allocation2 + $0x48] sm:$0xff]
        %v585 = vld [vmem:[#allocation2 + $0x50] sm:$0xff]
        %v586 = vld [vmem:[#allocation2 + $0x58] sm:$0xff]
        %v587 = vld [vmem:[#allocation2 + $0x60] sm:$0xff]
        %v588 = vld [vmem:[#allocation2 + $0x68] sm:$0xff]
        %v589 = vld [vmem:[#allocation2 + $0x70] sm:$0xff]
        %v590 = vld [vmem:[#allocation2 + $0x78] sm:$0xff]
        %v591 = vld [vmem:[#allocation2 + $0x80] sm:$0xff]
        %v592 = vld [vmem:[#allocation2 + $0x88] sm:$0xff]
        %v593 = vld [vmem:[#allocation2 + $0x90] sm:$0xff]
        %v594 = vld [vmem:[#allocation2 + $0x98] sm:$0xff]
        %v595 = vld [vmem:[#allocation2 + $0xa0] sm:$0xff]
        %v596 = vld [vmem:[#allocation2 + $0xa8] sm:$0xff]
        %v597 = vld [vmem:[#allocation2 + $0xb0] sm:$0xff]
        %v598 = vld [vmem:[#allocation2 + $0xb8] sm:$0xff]
        %v599 = vld [vmem:[#allocation2 + $0xc0] sm:$0xff]
        %v600 = vld [vmem:[#allocation2 + $0xc8] sm:$0xff]
        %v601 = vld [vmem:[#allocation2 + $0xd0] sm:$0xff]
        %v602 = vld [vmem:[#allocation2 + $0xd8] sm:$0xff]
        %v603 = vld [vmem:[#allocation2 + $0xe0] sm:$0xff]
        %v604 = vld [vmem:[#allocation2 + $0xe8] sm:$0xff]
        %v605 = vld [vmem:[#allocation2 + $0xf0] sm:$0xff]
        %v606 = vld [vmem:[#allocation2 + $0xf8] sm:$0xff]
        %v607 = vld [vmem:[%s195 + $0x8] sm:$0xf]
        %v608 = vld [vmem:[%s195 + $0xc] sm:$0xf]
        %v609 = vld [vmem:[%s195 + $0x10] sm:$0xf]
        %v610 = vld [vmem:[%s195 + $0x14] sm:$0xf]
        %v611 = vld [vmem:[%s195 + $0x18] sm:$0xf]
        %v612 = vld [vmem:[%s195 + $0x1c] sm:$0xf]
        %v613 = vld [vmem:[%s195 + $0x20] sm:$0xf]
        %v614 = vld [vmem:[%s195 + $0x24] sm:$0xf]
        %v615 = vld [vmem:[%s195 + $0x28] sm:$0xf]
        %v616 = vld [vmem:[%s195 + $0x2c] sm:$0xf]
        %v617 = vld [vmem:[%s195 + $0x30] sm:$0xf]
        %v618 = vld [vmem:[%s195 + $0x34] sm:$0xf]
        %v619 = vld [vmem:[%s195 + $0x38] sm:$0xf]
        %v620 = vld [vmem:[%s195 + $0x3c] sm:$0xf]
        %v621 = vld [vmem:[%s195 + $0x40] sm:$0xf]
        %v622 = vld [vmem:[%s195 + $0x44] sm:$0xf]
        %v623 = vld [vmem:[%s195 + $0x48] sm:$0xf]
        %v624 = vld [vmem:[%s195 + $0x4c] sm:$0xf]
        %v625 = vld [vmem:[%s195 + $0x50] sm:$0xf]
        %v626 = vld [vmem:[%s195 + $0x54] sm:$0xf]
        %v627 = vld [vmem:[%s195 + $0x58] sm:$0xf]
        %v628 = vld [vmem:[%s195 + $0x5c] sm:$0xf]
        %v629 = vld [vmem:[%s195 + $0x60] sm:$0xf]
        %v630 = vld [vmem:[%s195 + $0x64] sm:$0xf]
        %v631 = vld [vmem:[%s195 + $0x68] sm:$0xf]
        %v632 = vld [vmem:[%s195 + $0x6c] sm:$0xf]
        %v633 = vld [vmem:[%s195 + $0x70] sm:$0xf]
        %v634 = vld [vmem:[%s195 + $0x74] sm:$0xf]
        %v635 = vld [vmem:[%s195 + $0x78] sm:$0xf]
        %v636 = vld [vmem:[%s195 + $0x7c] sm:$0xf]
        %v637 = vld [vmem:[%s195 + $0x80] sm:$0xf]
        %v638 = vld [vmem:[%s195 + $0x84] sm:$0xf]
        %s639 = scalar_lea.vmem %s1, 24
        %v640 = vld [vmem:[%s639] sm:$0xf]
        %v641 = vld [vmem:[%s639 + $0x4] sm:$0xf]
        %v642 = vld [vmem:[%s639 + $0x8] sm:$0xf]
        %v643 = vld [vmem:[%s639 + $0xc] sm:$0xf]
        %v644 = vld [vmem:[%s639 + $0x10] sm:$0xf]
        %v645 = vld [vmem:[%s639 + $0x14] sm:$0xf]
        %v678 = vunpack.c.l.b16 %v607
        %v679 = vunpack.c.l.b16 %v608
        %v680 = vunpack.c.l.b16 %v609
        %v681 = vunpack.c.l.b16 %v610
        %v682 = vunpack.c.l.b16 %v611
        %v683 = vunpack.c.l.b16 %v612
        %v684 = vunpack.c.l.b16 %v613
        %v685 = vunpack.c.l.b16 %v614
        %v686 = vunpack.c.l.b16 %v615
        %v687 = vunpack.c.l.b16 %v616
        %v688 = vunpack.c.l.b16 %v617
        %v689 = vunpack.c.l.b16 %v618
        %v690 = vunpack.c.l.b16 %v619
        %v691 = vunpack.c.l.b16 %v620
        %v692 = vunpack.c.l.b16 %v621
        %v693 = vunpack.c.l.b16 %v622
        %v694 = vunpack.c.l.b16 %v623
        %v695 = vunpack.c.l.b16 %v624
        %v696 = vunpack.c.l.b16 %v625
        %v697 = vunpack.c.l.b16 %v626
        %v698 = vunpack.c.l.b16 %v627
        %v699 = vunpack.c.l.b16 %v628
        %v700 = vunpack.c.l.b16 %v629
        %v701 = vunpack.c.l.b16 %v630
        %v702 = vunpack.c.l.b16 %v631
        %v703 = vunpack.c.l.b16 %v632
        %v704 = vunpack.c.l.b16 %v633
        %v705 = vunpack.c.l.b16 %v634
        %v706 = vunpack.c.l.b16 %v635
        %v707 = vunpack.c.l.b16 %v636
        %v708 = vunpack.c.l.b16 %v637
        %v709 = vunpack.c.l.b16 %v638
        %v710 = vpack.c.b16 %v679, %v678
        %v711 = vpack.c.b16 %v681, %v680
        %v712 = vpack.c.b16 %v683, %v682
        %v713 = vpack.c.b16 %v685, %v684
        %v714 = vpack.c.b16 %v687, %v686
        %v715 = vpack.c.b16 %v689, %v688
        %v716 = vpack.c.b16 %v691, %v690
        %v717 = vpack.c.b16 %v693, %v692
        %v718 = vpack.c.b16 %v695, %v694
        %v719 = vpack.c.b16 %v697, %v696
        %v720 = vpack.c.b16 %v699, %v698
        %v721 = vpack.c.b16 %v701, %v700
        %v722 = vpack.c.b16 %v703, %v702
        %v723 = vpack.c.b16 %v705, %v704
        %v724 = vpack.c.b16 %v707, %v706
        %v725 = vpack.c.b16 %v709, %v708
        %v732 = vunpack.c.l.b16 %v640
        %v733 = vunpack.c.l.b16 %v641
        %v734 = vunpack.c.l.b16 %v642
        %v735 = vunpack.c.l.b16 %v643
        %v736 = vunpack.c.l.b16 %v644
        %v737 = vunpack.c.l.b16 %v645
        %v738 = vpack.c.b16 %v733, %v732
        %v739 = vpack.c.b16 %v735, %v734
        %v740 = vpack.c.b16 %v737, %v736
        %v745 = vsel %vm333, %v710, 0
        %v748 = vsel %vm333, %v711, 0
        %v751 = vsel %vm333, %v712, 0
        %v754 = vsel %vm333, %v713, 0
        %v757 = vsel %vm333, %v714, 0
        %v760 = vsel %vm333, %v715, 0
        %v763 = vsel %vm333, %v716, 0
        %v766 = vsel %vm333, %v717, 0
        %v769 = vsel %vm333, %v718, 0
        %v772 = vsel %vm333, %v719, 0
        %v775 = vsel %vm333, %v720, 0
        %v778 = vsel %vm333, %v721, 0
        %v781 = vsel %vm333, %v722, 0
        %v784 = vsel %vm333, %v723, 0
        %v787 = vsel %vm333, %v724, 0
        %v790 = vsel %vm333, %v725, 0
        %792 = vmatprep.subr.bf16.mxu0 0
        %793 = vmatpush1.bf16.msra.mxu0 0
        %794 = vmatprep.subr.bf16.mxu0 0
        %795 = vmatpush1.bf16.msra.mxu0 0
        %796 = vmatprep.subr.bf16.mxu0 0
        %797 = vmatpush1.bf16.msra.mxu0 0
        %798 = vmatprep.subr.bf16.mxu0 0
        %799 = vmatpush1.bf16.msra.mxu0 0
        %800 = vmatprep.subr.bf16.mxu0 0
        %801 = vmatpush1.bf16.msra.mxu0 0
        %802 = vmatprep.subr.bf16.mxu0 0
        %803 = vmatpush1.bf16.msra.mxu0 %v740
        %804 = vmatprep.subr.bf16.mxu0 0
        %805 = vmatpush1.bf16.msra.mxu0 %v739
        %806 = vmatprep.subr.bf16.mxu0 0
        %807 = vmatpush1.bf16.msra.mxu0 %v738
        %808 = vmatprep.subr.bf16.mxu0 0
        %809 = vmatpush2.bf16.msra.mxu0 0
        %810 = vmatprep.subr.bf16.mxu0 0
        %811 = vmatpush2.bf16.msra.mxu0 0
        %812 = vmatprep.subr.bf16.mxu0 0
        %813 = vmatpush2.bf16.msra.mxu0 0
        %814 = vmatprep.subr.bf16.mxu0 0
        %815 = vmatpush2.bf16.msra.mxu0 0
        %816 = vmatprep.subr.bf16.mxu0 0
        %817 = vmatpush2.bf16.msra.mxu0 0
        %818 = vmatprep.subr.bf16.mxu0 0
        %819 = vmatpush2.bf16.msra.mxu0 0
        %820 = vmatprep.subr.bf16.mxu0 0
        %821 = vmatpush2.bf16.msra.mxu0 0
        %822 = vmatprep.subr.bf16.mxu0 0
        %823 = vmatpush2.bf16.msra.mxu0 0
        %824 = vmatprep.mubr.bf16.mxu0 0
        %825 = vmatmul.mubr.bf16.gmra.mxu0 %v745
        %v826 = vpop.f32.mrf.mxu0
        %v827 = vadd.f32 0.0, %v826
        %v828 = vpop.f32.mrf.mxu0
        %v829 = vpop.f32.mrf.mxu0
        %v830 = vadd.f32 0.0, %v829
        %v831 = vpop.f32.mrf.mxu0
        %832 = vmatprep.mubr.bf16.mxu0 0
        %833 = vmatmul.mubr.bf16.gmra.mxu0 %v748
        %v834 = vpop.f32.mrf.mxu0
        %v835 = vadd.f32 0.0, %v834
        %v836 = vpop.f32.mrf.mxu0
        %v837 = vpop.f32.mrf.mxu0
        %v838 = vadd.f32 0.0, %v837
        %v839 = vpop.f32.mrf.mxu0
        %840 = vmatprep.mubr.bf16.mxu0 0
        %841 = vmatmul.mubr.bf16.gmra.mxu0 %v751
        %v842 = vpop.f32.mrf.mxu0
        %v843 = vadd.f32 0.0, %v842
        %v844 = vpop.f32.mrf.mxu0
        %v845 = vpop.f32.mrf.mxu0
        %v846 = vadd.f32 0.0, %v845
        %v847 = vpop.f32.mrf.mxu0
        %848 = vmatprep.mubr.bf16.mxu0 0
        %849 = vmatmul.mubr.bf16.gmra.mxu0 %v754
        %v850 = vpop.f32.mrf.mxu0
        %v851 = vadd.f32 0.0, %v850
        %v852 = vpop.f32.mrf.mxu0
        %v853 = vpop.f32.mrf.mxu0
        %v854 = vadd.f32 0.0, %v853
        %v855 = vpop.f32.mrf.mxu0
        %856 = vmatprep.mubr.bf16.mxu0 0
        %857 = vmatmul.mubr.bf16.gmra.mxu0 %v757
        %v858 = vpop.f32.mrf.mxu0
        %v859 = vadd.f32 0.0, %v858
        %v860 = vpop.f32.mrf.mxu0
        %v861 = vpop.f32.mrf.mxu0
        %v862 = vadd.f32 0.0, %v861
        %v863 = vpop.f32.mrf.mxu0
        %864 = vmatprep.mubr.bf16.mxu0 0
        %865 = vmatmul.mubr.bf16.gmra.mxu0 %v760
        %v866 = vpop.f32.mrf.mxu0
        %v867 = vadd.f32 0.0, %v866
        %v868 = vpop.f32.mrf.mxu0
        %v869 = vpop.f32.mrf.mxu0
        %v870 = vadd.f32 0.0, %v869
        %v871 = vpop.f32.mrf.mxu0
        %872 = vmatprep.mubr.bf16.mxu0 0
        %873 = vmatmul.mubr.bf16.gmra.mxu0 %v763
        %v874 = vpop.f32.mrf.mxu0
        %v875 = vadd.f32 0.0, %v874
        %v876 = vpop.f32.mrf.mxu0
        %v877 = vpop.f32.mrf.mxu0
        %v878 = vadd.f32 0.0, %v877
        %v879 = vpop.f32.mrf.mxu0
        %880 = vmatprep.mubr.bf16.mxu0 0
        %881 = vmatmul.mubr.bf16.gmra.mxu0 %v766
        %v882 = vpop.f32.mrf.mxu0
        %v883 = vadd.f32 0.0, %v882
        %v884 = vpop.f32.mrf.mxu0
        %v885 = vpop.f32.mrf.mxu0
        %v886 = vadd.f32 0.0, %v885
        %v887 = vpop.f32.mrf.mxu0
        %888 = vmatprep.mubr.bf16.mxu0 0
        %889 = vmatmul.mubr.bf16.gmra.mxu0 %v769
        %v890 = vpop.f32.mrf.mxu0
        %v891 = vadd.f32 0.0, %v890
        %v892 = vpop.f32.mrf.mxu0
        %v893 = vpop.f32.mrf.mxu0
        %v894 = vadd.f32 0.0, %v893
        %v895 = vpop.f32.mrf.mxu0
        %896 = vmatprep.mubr.bf16.mxu0 0
        %897 = vmatmul.mubr.bf16.gmra.mxu0 %v772
        %v898 = vpop.f32.mrf.mxu0
        %v899 = vadd.f32 0.0, %v898
        %v900 = vpop.f32.mrf.mxu0
        %v901 = vpop.f32.mrf.mxu0
        %v902 = vadd.f32 0.0, %v901
        %v903 = vpop.f32.mrf.mxu0
        %904 = vmatprep.mubr.bf16.mxu0 0
        %905 = vmatmul.mubr.bf16.gmra.mxu0 %v775
        %v906 = vpop.f32.mrf.mxu0
        %v907 = vadd.f32 0.0, %v906
        %v908 = vpop.f32.mrf.mxu0
        %v909 = vpop.f32.mrf.mxu0
        %v910 = vadd.f32 0.0, %v909
        %v911 = vpop.f32.mrf.mxu0
        %912 = vmatprep.mubr.bf16.mxu0 0
        %913 = vmatmul.mubr.bf16.gmra.mxu0 %v778
        %v914 = vpop.f32.mrf.mxu0
        %v915 = vadd.f32 0.0, %v914
        %v916 = vpop.f32.mrf.mxu0
        %v917 = vpop.f32.mrf.mxu0
        %v918 = vadd.f32 0.0, %v917
        %v919 = vpop.f32.mrf.mxu0
        %920 = vmatprep.mubr.bf16.mxu0 0
        %921 = vmatmul.mubr.bf16.gmra.mxu0 %v781
        %v922 = vpop.f32.mrf.mxu0
        %v923 = vadd.f32 0.0, %v922
        %v924 = vpop.f32.mrf.mxu0
        %v925 = vpop.f32.mrf.mxu0
        %v926 = vadd.f32 0.0, %v925
        %v927 = vpop.f32.mrf.mxu0
        %928 = vmatprep.mubr.bf16.mxu0 0
        %929 = vmatmul.mubr.bf16.gmra.mxu0 %v784
        %v930 = vpop.f32.mrf.mxu0
        %v931 = vadd.f32 0.0, %v930
        %v932 = vpop.f32.mrf.mxu0
        %v933 = vpop.f32.mrf.mxu0
        %v934 = vadd.f32 0.0, %v933
        %v935 = vpop.f32.mrf.mxu0
        %936 = vmatprep.mubr.bf16.mxu0 0
        %937 = vmatmul.mubr.bf16.gmra.mxu0 %v787
        %v938 = vpop.f32.mrf.mxu0
        %v939 = vadd.f32 0.0, %v938
        %v940 = vpop.f32.mrf.mxu0
        %v941 = vpop.f32.mrf.mxu0
        %v942 = vadd.f32 0.0, %v941
        %v943 = vpop.f32.mrf.mxu0
        %944 = vmatprep.mubr.bf16.mxu0 0
        %945 = vmatmul.mubr.bf16.gmra.mxu0 %v790
        %v946 = vpop.f32.mrf.mxu0
        %v947 = vadd.f32 0.0, %v946
        %v948 = vpop.f32.mrf.mxu0
        %v949 = vpop.f32.mrf.mxu0
        %v950 = vadd.f32 0.0, %v949
        %v951 = vpop.f32.mrf.mxu0
        %952 = vdwg.mxu0
        %v953 = vadd.f32 %v575, %v827
        %v954 = vadd.f32 %v576, %v830
        %v955 = vadd.f32 %v577, %v835
        %v956 = vadd.f32 %v578, %v838
        %v957 = vadd.f32 %v579, %v843
        %v958 = vadd.f32 %v580, %v846
        %v959 = vadd.f32 %v581, %v851
        %v960 = vadd.f32 %v582, %v854
        %v961 = vadd.f32 %v583, %v859
        %v962 = vadd.f32 %v584, %v862
        %v963 = vadd.f32 %v585, %v867
        %v964 = vadd.f32 %v586, %v870
        %v965 = vadd.f32 %v587, %v875
        %v966 = vadd.f32 %v588, %v878
        %v967 = vadd.f32 %v589, %v883
        %v968 = vadd.f32 %v590, %v886
        %v969 = vadd.f32 %v591, %v891
        %v970 = vadd.f32 %v592, %v894
        %v971 = vadd.f32 %v593, %v899
        %v972 = vadd.f32 %v594, %v902
        %v973 = vadd.f32 %v595, %v907
        %v974 = vadd.f32 %v596, %v910
        %v975 = vadd.f32 %v597, %v915
        %v976 = vadd.f32 %v598, %v918
        %v977 = vadd.f32 %v599, %v923
        %v978 = vadd.f32 %v600, %v926
        %v979 = vadd.f32 %v601, %v931
        %v980 = vadd.f32 %v602, %v934
        %v981 = vadd.f32 %v603, %v939
        %v982 = vadd.f32 %v604, %v942
        %v983 = vadd.f32 %v605, %v947
        %v984 = vadd.f32 %v606, %v950
        %985 = vst [vmem:[#allocation2] sm:$0xff] %v953
        %986 = vst [vmem:[#allocation2 + $0x8] sm:$0xff] %v954
        %987 = vst [vmem:[#allocation2 + $0x10] sm:$0xff] %v955
        %988 = vst [vmem:[#allocation2 + $0x18] sm:$0xff] %v956
        %989 = vst [vmem:[#allocation2 + $0x20] sm:$0xff] %v957
        %990 = vst [vmem:[#allocation2 + $0x28] sm:$0xff] %v958
        %991 = vst [vmem:[#allocation2 + $0x30] sm:$0xff] %v959
        %992 = vst [vmem:[#allocation2 + $0x38] sm:$0xff] %v960
        %993 = vst [vmem:[#allocation2 + $0x40] sm:$0xff] %v961
        %994 = vst [vmem:[#allocation2 + $0x48] sm:$0xff] %v962
        %995 = vst [vmem:[#allocation2 + $0x50] sm:$0xff] %v963
        %996 = vst [vmem:[#allocation2 + $0x58] sm:$0xff] %v964
        %997 = vst [vmem:[#allocation2 + $0x60] sm:$0xff] %v965
        %998 = vst [vmem:[#allocation2 + $0x68] sm:$0xff] %v966
        %999 = vst [vmem:[#allocation2 + $0x70] sm:$0xff] %v967
        %1000 = vst [vmem:[#allocation2 + $0x78] sm:$0xff] %v968
        %1001 = vst [vmem:[#allocation2 + $0x80] sm:$0xff] %v969
        %1002 = vst [vmem:[#allocation2 + $0x88] sm:$0xff] %v970
        %1003 = vst [vmem:[#allocation2 + $0x90] sm:$0xff] %v971
        %1004 = vst [vmem:[#allocation2 + $0x98] sm:$0xff] %v972
        %1005 = vst [vmem:[#allocation2 + $0xa0] sm:$0xff] %v973
        %1006 = vst [vmem:[#allocation2 + $0xa8] sm:$0xff] %v974
        %1007 = vst [vmem:[#allocation2 + $0xb0] sm:$0xff] %v975
        %1008 = vst [vmem:[#allocation2 + $0xb8] sm:$0xff] %v976
        %1009 = vst [vmem:[#allocation2 + $0xc0] sm:$0xff] %v977
        %1010 = vst [vmem:[#allocation2 + $0xc8] sm:$0xff] %v978
        %1011 = vst [vmem:[#allocation2 + $0xd0] sm:$0xff] %v979
        %1012 = vst [vmem:[#allocation2 + $0xd8] sm:$0xff] %v980
        %1013 = vst [vmem:[#allocation2 + $0xe0] sm:$0xff] %v981
        %1014 = vst [vmem:[#allocation2 + $0xe8] sm:$0xff] %v982
        %1015 = vst [vmem:[#allocation2 + $0xf0] sm:$0xff] %v983
        %1016 = vst [vmem:[#allocation2 + $0xf8] sm:$0xff] %v984
        %v1017 = vld [vmem:[#allocation2] sm:$0xff]
        %v1018 = vld [vmem:[#allocation2 + $0x8] sm:$0xff]
        %v1019 = vld [vmem:[#allocation2 + $0x10] sm:$0xff]
        %v1020 = vld [vmem:[#allocation2 + $0x18] sm:$0xff]
        %v1021 = vld [vmem:[#allocation2 + $0x20] sm:$0xff]
        %v1022 = vld [vmem:[#allocation2 + $0x28] sm:$0xff]
        %v1023 = vld [vmem:[#allocation2 + $0x30] sm:$0xff]
        %v1024 = vld [vmem:[#allocation2 + $0x38] sm:$0xff]
        %v1025 = vld [vmem:[#allocation2 + $0x40] sm:$0xff]
        %v1026 = vld [vmem:[#allocation2 + $0x48] sm:$0xff]
        %v1027 = vld [vmem:[#allocation2 + $0x50] sm:$0xff]
        %v1028 = vld [vmem:[#allocation2 + $0x58] sm:$0xff]
        %v1029 = vld [vmem:[#allocation2 + $0x60] sm:$0xff]
        %v1030 = vld [vmem:[#allocation2 + $0x68] sm:$0xff]
        %v1031 = vld [vmem:[#allocation2 + $0x70] sm:$0xff]
        %v1032 = vld [vmem:[#allocation2 + $0x78] sm:$0xff]
        %v1033 = vld [vmem:[#allocation2 + $0x80] sm:$0xff]
        %v1034 = vld [vmem:[#allocation2 + $0x88] sm:$0xff]
        %v1035 = vld [vmem:[#allocation2 + $0x90] sm:$0xff]
        %v1036 = vld [vmem:[#allocation2 + $0x98] sm:$0xff]
        %v1037 = vld [vmem:[#allocation2 + $0xa0] sm:$0xff]
        %v1038 = vld [vmem:[#allocation2 + $0xa8] sm:$0xff]
        %v1039 = vld [vmem:[#allocation2 + $0xb0] sm:$0xff]
        %v1040 = vld [vmem:[#allocation2 + $0xb8] sm:$0xff]
        %v1041 = vld [vmem:[#allocation2 + $0xc0] sm:$0xff]
        %v1042 = vld [vmem:[#allocation2 + $0xc8] sm:$0xff]
        %v1043 = vld [vmem:[#allocation2 + $0xd0] sm:$0xff]
        %v1044 = vld [vmem:[#allocation2 + $0xd8] sm:$0xff]
        %v1045 = vld [vmem:[#allocation2 + $0xe0] sm:$0xff]
        %v1046 = vld [vmem:[#allocation2 + $0xe8] sm:$0xff]
        %v1047 = vld [vmem:[#allocation2 + $0xf0] sm:$0xff]
        %v1048 = vld [vmem:[#allocation2 + $0xf8] sm:$0xff]
        %v1049 = vadd.f32 %v1017, %v1018
        %v1050 = vadd.f32 %v1049, %v1019
        %v1051 = vadd.f32 %v1050, %v1020
        %v1052 = vadd.f32 %v1051, %v1021
        %v1053 = vadd.f32 %v1052, %v1022
        %v1054 = vadd.f32 %v1053, %v1023
        %v1055 = vadd.f32 %v1054, %v1024
        %v1056 = vadd.f32 %v1055, %v1025
        %v1057 = vadd.f32 %v1056, %v1026
        %v1058 = vadd.f32 %v1057, %v1027
        %v1059 = vadd.f32 %v1058, %v1028
        %v1060 = vadd.f32 %v1059, %v1029
        %v1061 = vadd.f32 %v1060, %v1030
        %v1062 = vadd.f32 %v1061, %v1031
        %v1063 = vadd.f32 %v1062, %v1032
        %v1064 = vadd.f32 %v1063, %v1033
        %v1065 = vadd.f32 %v1064, %v1034
        %v1066 = vadd.f32 %v1065, %v1035
        %v1067 = vadd.f32 %v1066, %v1036
        %v1068 = vadd.f32 %v1067, %v1037
        %v1069 = vadd.f32 %v1068, %v1038
        %v1070 = vadd.f32 %v1069, %v1039
        %v1071 = vadd.f32 %v1070, %v1040
        %v1072 = vadd.f32 %v1071, %v1041
        %v1073 = vadd.f32 %v1072, %v1042
        %v1074 = vadd.f32 %v1073, %v1043
        %v1075 = vadd.f32 %v1074, %v1044
        %v1076 = vadd.f32 %v1075, %v1045
        %v1077 = vadd.f32 %v1076, %v1046
        %v1078 = vadd.f32 %v1077, %v1047
        %v1079 = vadd.f32 %v1078, %v1048
        %v1080 = vrot.slane %v1079, 4
        %v1081 = vadd.f32 %v1079, %v1080
        %v1082 = vrot.slane %v1081, 2
        %v1083 = vadd.f32 %v1081, %v1082
        %v1084 = vrot.slane %v1083, 1
        %v1085 = vadd.f32 %v1083, %v1084
        %v1086 = vadd.f32 %v1085, 0.0
        %v1087 = vmul.f32 %v1017, %v1017
        %v1088 = vmul.f32 %v1018, %v1018
        %v1089 = vmul.f32 %v1019, %v1019
        %v1090 = vmul.f32 %v1020, %v1020
        %v1091 = vmul.f32 %v1021, %v1021
        %v1092 = vmul.f32 %v1022, %v1022
        %v1093 = vmul.f32 %v1023, %v1023
        %v1094 = vmul.f32 %v1024, %v1024
        %v1095 = vmul.f32 %v1025, %v1025
        %v1096 = vmul.f32 %v1026, %v1026
        %v1097 = vmul.f32 %v1027, %v1027
        %v1098 = vmul.f32 %v1028, %v1028
        %v1099 = vmul.f32 %v1029, %v1029
        %v1100 = vmul.f32 %v1030, %v1030
        %v1101 = vmul.f32 %v1031, %v1031
        %v1102 = vmul.f32 %v1032, %v1032
        %v1103 = vmul.f32 %v1033, %v1033
        %v1104 = vmul.f32 %v1034, %v1034
        %v1105 = vmul.f32 %v1035, %v1035
        %v1106 = vmul.f32 %v1036, %v1036
        %v1107 = vmul.f32 %v1037, %v1037
        %v1108 = vmul.f32 %v1038, %v1038
        %v1109 = vmul.f32 %v1039, %v1039
        %v1110 = vmul.f32 %v1040, %v1040
        %v1111 = vmul.f32 %v1041, %v1041
        %v1112 = vmul.f32 %v1042, %v1042
        %v1113 = vmul.f32 %v1043, %v1043
        %v1114 = vmul.f32 %v1044, %v1044
        %v1115 = vmul.f32 %v1045, %v1045
        %v1116 = vmul.f32 %v1046, %v1046
        %v1117 = vmul.f32 %v1047, %v1047
        %v1118 = vmul.f32 %v1048, %v1048
        %v1119 = vadd.f32 %v1087, %v1088
        %v1120 = vadd.f32 %v1119, %v1089
        %v1121 = vadd.f32 %v1120, %v1090
        %v1122 = vadd.f32 %v1121, %v1091
        %v1123 = vadd.f32 %v1122, %v1092
        %v1124 = vadd.f32 %v1123, %v1093
        %v1125 = vadd.f32 %v1124, %v1094
        %v1126 = vadd.f32 %v1125, %v1095
        %v1127 = vadd.f32 %v1126, %v1096
        %v1128 = vadd.f32 %v1127, %v1097
        %v1129 = vadd.f32 %v1128, %v1098
        %v1130 = vadd.f32 %v1129, %v1099
        %v1131 = vadd.f32 %v1130, %v1100
        %v1132 = vadd.f32 %v1131, %v1101
        %v1133 = vadd.f32 %v1132, %v1102
        %v1134 = vadd.f32 %v1133, %v1103
        %v1135 = vadd.f32 %v1134, %v1104
        %v1136 = vadd.f32 %v1135, %v1105
        %v1137 = vadd.f32 %v1136, %v1106
        %v1138 = vadd.f32 %v1137, %v1107
        %v1139 = vadd.f32 %v1138, %v1108
        %v1140 = vadd.f32 %v1139, %v1109
        %v1141 = vadd.f32 %v1140, %v1110
        %v1142 = vadd.f32 %v1141, %v1111
        %v1143 = vadd.f32 %v1142, %v1112
        %v1144 = vadd.f32 %v1143, %v1113
        %v1145 = vadd.f32 %v1144, %v1114
        %v1146 = vadd.f32 %v1145, %v1115
        %v1147 = vadd.f32 %v1146, %v1116
        %v1148 = vadd.f32 %v1147, %v1117
        %v1149 = vadd.f32 %v1148, %v1118
        %v1150 = vrot.slane %v1149, 4
        %v1151 = vadd.f32 %v1149, %v1150
        %v1152 = vrot.slane %v1151, 2
        %v1153 = vadd.f32 %v1151, %v1152
        %v1154 = vrot.slane %v1153, 1
        %v1155 = vadd.f32 %v1153, %v1154
        %v1156 = vadd.f32 %v1155, 0.0
        %v1157 = vmul.f32 %v1086, 0.00390625
        %v1158 = vmul.f32 %v1156, 0.00390625
        %v1159 = vmul.f32 %v1157, %v1157
        %v1160 = vsub.f32 %v1158, %v1159
        %v1161 = vmax.f32 %v1160, 0.0
        %v1162 = vadd.f32 %v1161, 1e-05
        %v1163 = vrsqrt.pop %v1162
        %v1164 = vld [vmem:[%s2] sm:$0x1]
        %v1165 = vmul.f32 %v1164, %v1163
        %v1166 = vld [vmem:[%s3] sm:$0x1]
        %v1167 = vmul.f32 %v1157, %v1165
        %v1168 = vsub.f32 %v1166, %v1167
        %v1170 = vlaneseq
        %v1171 = vshrl.u32 %v1170, 7
        %v1172 = vsub.s32 0, %v1171
        %v1173 = vrot.slane %v1165, %v1172
        %v1175 = vmul.f32 %v1017, %v1173
        %v1176 = vmul.f32 %v1018, %v1173
        %v1177 = vmul.f32 %v1019, %v1173
        %v1178 = vmul.f32 %v1020, %v1173
        %v1179 = vmul.f32 %v1021, %v1173
        %v1180 = vmul.f32 %v1022, %v1173
        %v1181 = vmul.f32 %v1023, %v1173
        %v1182 = vmul.f32 %v1024, %v1173
        %v1183 = vmul.f32 %v1025, %v1173
        %v1184 = vmul.f32 %v1026, %v1173
        %v1185 = vmul.f32 %v1027, %v1173
        %v1186 = vmul.f32 %v1028, %v1173
        %v1187 = vmul.f32 %v1029, %v1173
        %v1188 = vmul.f32 %v1030, %v1173
        %v1189 = vmul.f32 %v1031, %v1173
        %v1190 = vmul.f32 %v1032, %v1173
        %v1191 = vmul.f32 %v1033, %v1173
        %v1192 = vmul.f32 %v1034, %v1173
        %v1193 = vmul.f32 %v1035, %v1173
        %v1194 = vmul.f32 %v1036, %v1173
        %v1195 = vmul.f32 %v1037, %v1173
        %v1196 = vmul.f32 %v1038, %v1173
        %v1197 = vmul.f32 %v1039, %v1173
        %v1198 = vmul.f32 %v1040, %v1173
        %v1199 = vmul.f32 %v1041, %v1173
        %v1200 = vmul.f32 %v1042, %v1173
        %v1201 = vmul.f32 %v1043, %v1173
        %v1202 = vmul.f32 %v1044, %v1173
        %v1203 = vmul.f32 %v1045, %v1173
        %v1204 = vmul.f32 %v1046, %v1173
        %v1205 = vmul.f32 %v1047, %v1173
        %v1206 = vmul.f32 %v1048, %v1173
        %v1208 = vlaneseq
        %v1209 = vshrl.u32 %v1208, 7
        %v1210 = vsub.s32 0, %v1209
        %v1211 = vrot.slane %v1168, %v1210
        %v1213 = vadd.f32 %v1175, %v1211
        %v1214 = vadd.f32 %v1176, %v1211
        %v1215 = vadd.f32 %v1177, %v1211
        %v1216 = vadd.f32 %v1178, %v1211
        %v1217 = vadd.f32 %v1179, %v1211
        %v1218 = vadd.f32 %v1180, %v1211
        %v1219 = vadd.f32 %v1181, %v1211
        %v1220 = vadd.f32 %v1182, %v1211
        %v1221 = vadd.f32 %v1183, %v1211
        %v1222 = vadd.f32 %v1184, %v1211
        %v1223 = vadd.f32 %v1185, %v1211
        %v1224 = vadd.f32 %v1186, %v1211
        %v1225 = vadd.f32 %v1187, %v1211
        %v1226 = vadd.f32 %v1188, %v1211
        %v1227 = vadd.f32 %v1189, %v1211
        %v1228 = vadd.f32 %v1190, %v1211
        %v1229 = vadd.f32 %v1191, %v1211
        %v1230 = vadd.f32 %v1192, %v1211
        %v1231 = vadd.f32 %v1193, %v1211
        %v1232 = vadd.f32 %v1194, %v1211
        %v1233 = vadd.f32 %v1195, %v1211
        %v1234 = vadd.f32 %v1196, %v1211
        %v1235 = vadd.f32 %v1197, %v1211
        %v1236 = vadd.f32 %v1198, %v1211
        %v1237 = vadd.f32 %v1199, %v1211
        %v1238 = vadd.f32 %v1200, %v1211
        %v1239 = vadd.f32 %v1201, %v1211
        %v1240 = vadd.f32 %v1202, %v1211
        %v1241 = vadd.f32 %v1203, %v1211
        %v1242 = vadd.f32 %v1204, %v1211
        %v1243 = vadd.f32 %v1205, %v1211
        %v1244 = vadd.f32 %v1206, %v1211
        %vm1245 = vcmp.ge.f32.partialorder %v1213, 0.0
        %vm1246 = vcmp.ge.f32.partialorder %v1214, 0.0
        %vm1247 = vcmp.ge.f32.partialorder %v1215, 0.0
        %vm1248 = vcmp.ge.f32.partialorder %v1216, 0.0
        %vm1249 = vcmp.ge.f32.partialorder %v1217, 0.0
        %vm1250 = vcmp.ge.f32.partialorder %v1218, 0.0
        %vm1251 = vcmp.ge.f32.partialorder %v1219, 0.0
        %vm1252 = vcmp.ge.f32.partialorder %v1220, 0.0
        %vm1253 = vcmp.ge.f32.partialorder %v1221, 0.0
        %vm1254 = vcmp.ge.f32.partialorder %v1222, 0.0
        %vm1255 = vcmp.ge.f32.partialorder %v1223, 0.0
        %vm1256 = vcmp.ge.f32.partialorder %v1224, 0.0
        %vm1257 = vcmp.ge.f32.partialorder %v1225, 0.0
        %vm1258 = vcmp.ge.f32.partialorder %v1226, 0.0
        %vm1259 = vcmp.ge.f32.partialorder %v1227, 0.0
        %vm1260 = vcmp.ge.f32.partialorder %v1228, 0.0
        %vm1261 = vcmp.ge.f32.partialorder %v1229, 0.0
        %vm1262 = vcmp.ge.f32.partialorder %v1230, 0.0
        %vm1263 = vcmp.ge.f32.partialorder %v1231, 0.0
        %vm1264 = vcmp.ge.f32.partialorder %v1232, 0.0
        %vm1265 = vcmp.ge.f32.partialorder %v1233, 0.0
        %vm1266 = vcmp.ge.f32.partialorder %v1234, 0.0
        %vm1267 = vcmp.ge.f32.partialorder %v1235, 0.0
        %vm1268 = vcmp.ge.f32.partialorder %v1236, 0.0
        %vm1269 = vcmp.ge.f32.partialorder %v1237, 0.0
        %vm1270 = vcmp.ge.f32.partialorder %v1238, 0.0
        %vm1271 = vcmp.ge.f32.partialorder %v1239, 0.0
        %vm1272 = vcmp.ge.f32.partialorder %v1240, 0.0
        %vm1273 = vcmp.ge.f32.partialorder %v1241, 0.0
        %vm1274 = vcmp.ge.f32.partialorder %v1242, 0.0
        %vm1275 = vcmp.ge.f32.partialorder %v1243, 0.0
        %vm1276 = vcmp.ge.f32.partialorder %v1244, 0.0
        %v1277 = vmul.f32 %v1213, 0.2
        %v1278 = vmul.f32 %v1214, 0.2
        %v1279 = vmul.f32 %v1215, 0.2
        %v1280 = vmul.f32 %v1216, 0.2
        %v1281 = vmul.f32 %v1217, 0.2
        %v1282 = vmul.f32 %v1218, 0.2
        %v1283 = vmul.f32 %v1219, 0.2
        %v1284 = vmul.f32 %v1220, 0.2
        %v1285 = vmul.f32 %v1221, 0.2
        %v1286 = vmul.f32 %v1222, 0.2
        %v1287 = vmul.f32 %v1223, 0.2
        %v1288 = vmul.f32 %v1224, 0.2
        %v1289 = vmul.f32 %v1225, 0.2
        %v1290 = vmul.f32 %v1226, 0.2
        %v1291 = vmul.f32 %v1227, 0.2
        %v1292 = vmul.f32 %v1228, 0.2
        %v1293 = vmul.f32 %v1229, 0.2
        %v1294 = vmul.f32 %v1230, 0.2
        %v1295 = vmul.f32 %v1231, 0.2
        %v1296 = vmul.f32 %v1232, 0.2
        %v1297 = vmul.f32 %v1233, 0.2
        %v1298 = vmul.f32 %v1234, 0.2
        %v1299 = vmul.f32 %v1235, 0.2
        %v1300 = vmul.f32 %v1236, 0.2
        %v1301 = vmul.f32 %v1237, 0.2
        %v1302 = vmul.f32 %v1238, 0.2
        %v1303 = vmul.f32 %v1239, 0.2
        %v1304 = vmul.f32 %v1240, 0.2
        %v1305 = vmul.f32 %v1241, 0.2
        %v1306 = vmul.f32 %v1242, 0.2
        %v1307 = vmul.f32 %v1243, 0.2
        %v1308 = vmul.f32 %v1244, 0.2
        %v1309 = vsel %vm1245, %v1213, %v1277
        %v1310 = vsel %vm1246, %v1214, %v1278
        %v1311 = vsel %vm1247, %v1215, %v1279
        %v1312 = vsel %vm1248, %v1216, %v1280
        %v1313 = vsel %vm1249, %v1217, %v1281
        %v1314 = vsel %vm1250, %v1218, %v1282
        %v1315 = vsel %vm1251, %v1219, %v1283
        %v1316 = vsel %vm1252, %v1220, %v1284
        %v1317 = vsel %vm1253, %v1221, %v1285
        %v1318 = vsel %vm1254, %v1222, %v1286
        %v1319 = vsel %vm1255, %v1223, %v1287
        %v1320 = vsel %vm1256, %v1224, %v1288
        %v1321 = vsel %vm1257, %v1225, %v1289
        %v1322 = vsel %vm1258, %v1226, %v1290
        %v1323 = vsel %vm1259, %v1227, %v1291
        %v1324 = vsel %vm1260, %v1228, %v1292
        %v1325 = vsel %vm1261, %v1229, %v1293
        %v1326 = vsel %vm1262, %v1230, %v1294
        %v1327 = vsel %vm1263, %v1231, %v1295
        %v1328 = vsel %vm1264, %v1232, %v1296
        %v1329 = vsel %vm1265, %v1233, %v1297
        %v1330 = vsel %vm1266, %v1234, %v1298
        %v1331 = vsel %vm1267, %v1235, %v1299
        %v1332 = vsel %vm1268, %v1236, %v1300
        %v1333 = vsel %vm1269, %v1237, %v1301
        %v1334 = vsel %vm1270, %v1238, %v1302
        %v1335 = vsel %vm1271, %v1239, %v1303
        %v1336 = vsel %vm1272, %v1240, %v1304
        %v1337 = vsel %vm1273, %v1241, %v1305
        %v1338 = vsel %vm1274, %v1242, %v1306
        %v1339 = vsel %vm1275, %v1243, %v1307
        %v1340 = vsel %vm1276, %v1244, %v1308
        %v1341 = vpack.c.bf16 %v1310, %v1309
        %v1342 = vpack.c.bf16 %v1312, %v1311
        %v1343 = vpack.c.bf16 %v1314, %v1313
        %v1344 = vpack.c.bf16 %v1316, %v1315
        %v1345 = vpack.c.bf16 %v1318, %v1317
        %v1346 = vpack.c.bf16 %v1320, %v1319
        %v1347 = vpack.c.bf16 %v1322, %v1321
        %v1348 = vpack.c.bf16 %v1324, %v1323
        %v1349 = vpack.c.bf16 %v1326, %v1325
        %v1350 = vpack.c.bf16 %v1328, %v1327
        %v1351 = vpack.c.bf16 %v1330, %v1329
        %v1352 = vpack.c.bf16 %v1332, %v1331
        %v1353 = vpack.c.bf16 %v1334, %v1333
        %v1354 = vpack.c.bf16 %v1336, %v1335
        %v1355 = vpack.c.bf16 %v1338, %v1337
        %v1356 = vpack.c.bf16 %v1340, %v1339
        %v1373 = vunpack.c.l.b16 %v1341
        %v1374 = vunpack.c.h.b16 %v1341
        %v1375 = vunpack.c.l.b16 %v1342
        %v1376 = vunpack.c.h.b16 %v1342
        %v1377 = vunpack.c.l.b16 %v1343
        %v1378 = vunpack.c.h.b16 %v1343
        %v1379 = vunpack.c.l.b16 %v1344
        %v1380 = vunpack.c.h.b16 %v1344
        %v1381 = vunpack.c.l.b16 %v1345
        %v1382 = vunpack.c.h.b16 %v1345
        %v1383 = vunpack.c.l.b16 %v1346
        %v1384 = vunpack.c.h.b16 %v1346
        %v1385 = vunpack.c.l.b16 %v1347
        %v1386 = vunpack.c.h.b16 %v1347
        %v1387 = vunpack.c.l.b16 %v1348
        %v1388 = vunpack.c.h.b16 %v1348
        %v1389 = vunpack.c.l.b16 %v1349
        %v1390 = vunpack.c.h.b16 %v1349
        %v1391 = vunpack.c.l.b16 %v1350
        %v1392 = vunpack.c.h.b16 %v1350
        %v1393 = vunpack.c.l.b16 %v1351
        %v1394 = vunpack.c.h.b16 %v1351
        %v1395 = vunpack.c.l.b16 %v1352
        %v1396 = vunpack.c.h.b16 %v1352
        %v1397 = vunpack.c.l.b16 %v1353
        %v1398 = vunpack.c.h.b16 %v1353
        %v1399 = vunpack.c.l.b16 %v1354
        %v1400 = vunpack.c.h.b16 %v1354
        %v1401 = vunpack.c.l.b16 %v1355
        %v1402 = vunpack.c.h.b16 %v1355
        %v1403 = vunpack.c.l.b16 %v1356
        %v1404 = vunpack.c.h.b16 %v1356
        %v1405 = vpack.c.b16 %v1373, %v1373
        %v1406 = vpack.c.b16 %v1374, %v1374
        %v1407 = vpack.c.b16 %v1375, %v1375
        %v1408 = vpack.c.b16 %v1376, %v1376
        %v1409 = vpack.c.b16 %v1377, %v1377
        %v1410 = vpack.c.b16 %v1378, %v1378
        %v1411 = vpack.c.b16 %v1379, %v1379
        %v1412 = vpack.c.b16 %v1380, %v1380
        %v1413 = vpack.c.b16 %v1381, %v1381
        %v1414 = vpack.c.b16 %v1382, %v1382
        %v1415 = vpack.c.b16 %v1383, %v1383
        %v1416 = vpack.c.b16 %v1384, %v1384
        %v1417 = vpack.c.b16 %v1385, %v1385
        %v1418 = vpack.c.b16 %v1386, %v1386
        %v1419 = vpack.c.b16 %v1387, %v1387
        %v1420 = vpack.c.b16 %v1388, %v1388
        %v1421 = vpack.c.b16 %v1389, %v1389
        %v1422 = vpack.c.b16 %v1390, %v1390
        %v1423 = vpack.c.b16 %v1391, %v1391
        %v1424 = vpack.c.b16 %v1392, %v1392
        %v1425 = vpack.c.b16 %v1393, %v1393
        %v1426 = vpack.c.b16 %v1394, %v1394
        %v1427 = vpack.c.b16 %v1395, %v1395
        %v1428 = vpack.c.b16 %v1396, %v1396
        %v1429 = vpack.c.b16 %v1397, %v1397
        %v1430 = vpack.c.b16 %v1398, %v1398
        %v1431 = vpack.c.b16 %v1399, %v1399
        %v1432 = vpack.c.b16 %v1400, %v1400
        %v1433 = vpack.c.b16 %v1401, %v1401
        %v1434 = vpack.c.b16 %v1402, %v1402
        %v1435 = vpack.c.b16 %v1403, %v1403
        %v1436 = vpack.c.b16 %v1404, %v1404
        %1469 = vst [vmem:[%s190] sm:$0xf] %v1405
        %1470 = vst [vmem:[%s190 + $0x4] sm:$0xf] %v1406
        %1471 = vst [vmem:[%s190 + $0x8] sm:$0xf] %v1407
        %1472 = vst [vmem:[%s190 + $0xc] sm:$0xf] %v1408
        %1473 = vst [vmem:[%s190 + $0x10] sm:$0xf] %v1409
        %1474 = vst [vmem:[%s190 + $0x14] sm:$0xf] %v1410
        %1475 = vst [vmem:[%s190 + $0x18] sm:$0xf] %v1411
        %1476 = vst [vmem:[%s190 + $0x1c] sm:$0xf] %v1412
        %1477 = vst [vmem:[%s190 + $0x20] sm:$0xf] %v1413
        %1478 = vst [vmem:[%s190 + $0x24] sm:$0xf] %v1414
        %1479 = vst [vmem:[%s190 + $0x28] sm:$0xf] %v1415
        %1480 = vst [vmem:[%s190 + $0x2c] sm:$0xf] %v1416
        %1481 = vst [vmem:[%s190 + $0x30] sm:$0xf] %v1417
        %1482 = vst [vmem:[%s190 + $0x34] sm:$0xf] %v1418
        %1483 = vst [vmem:[%s190 + $0x38] sm:$0xf] %v1419
        %1484 = vst [vmem:[%s190 + $0x3c] sm:$0xf] %v1420
        %1485 = vst [vmem:[%s190 + $0x40] sm:$0xf] %v1421
        %1486 = vst [vmem:[%s190 + $0x44] sm:$0xf] %v1422
        %1487 = vst [vmem:[%s190 + $0x48] sm:$0xf] %v1423
        %1488 = vst [vmem:[%s190 + $0x4c] sm:$0xf] %v1424
        %1489 = vst [vmem:[%s190 + $0x50] sm:$0xf] %v1425
        %1490 = vst [vmem:[%s190 + $0x54] sm:$0xf] %v1426
        %1491 = vst [vmem:[%s190 + $0x58] sm:$0xf] %v1427
        %1492 = vst [vmem:[%s190 + $0x5c] sm:$0xf] %v1428
        %1493 = vst [vmem:[%s190 + $0x60] sm:$0xf] %v1429
        %1494 = vst [vmem:[%s190 + $0x64] sm:$0xf] %v1430
        %1495 = vst [vmem:[%s190 + $0x68] sm:$0xf] %v1431
        %1496 = vst [vmem:[%s190 + $0x6c] sm:$0xf] %v1432
        %1497 = vst [vmem:[%s190 + $0x70] sm:$0xf] %v1433
        %1498 = vst [vmem:[%s190 + $0x74] sm:$0xf] %v1434
        %1499 = vst [vmem:[%s190 + $0x78] sm:$0xf] %v1435
        %1500 = vst [vmem:[%s190 + $0x7c] sm:$0xf] %v1436
        %s1501 = sand.u32 %s115, 1
        %s1502 = scalar_lea.sflag [#allocation4], %s1501
        %s1503 = sand.u32 %s115, 1
        %s1504 = smul.addr %s1503, 128
        %s1505 = scalar_lea.vmem [#allocation3], %s1504
        // Predicated region
        $region37: #{tpu_custom_call.1} parent=35 // pred_check
          %p1506 = pneg %p125
        $region38: #{tpu_custom_call.1} parent=35 // pred_check_branch
          %1508 = sbr.rel (%p1506) target = $region40
        $region39: #{tpu_custom_call.1} parent=35 // pred_region
          %s1510 = ssub.s32 2048, 2048
          %1511 = vsyncadd %s1502, %s1510
          %s1512 = smul.addr %s18, 32
          %s1513 = smul.addr %s1512, 64
          %s1514 = scalar_lea.hbm %s4, %s1513
          %s1515 = sshll.u32 %s1505, 4
          %s1516 = int_to_ptr.vmem [resolvable:$true] %s1515
          %1521 = dma.vmem_to_hbm [thread:$0]  %s1516, 2048, %s1514, %s1502, 64, 64, 4
        $region40: #{tpu_custom_call.1} parent=35 // pred_fallthru
          _
      $region36: #{tpu_custom_call.1} parent=5 // pred_fallthru
        _
      %p1522 = scmp.le.s32.totalorder 2, %s13
      // Predicated region
      $region41: #{tpu_custom_call.1} parent=5 // pred_check
        %p1523 = pneg %p1522
      $region42: #{tpu_custom_call.1} parent=5 // pred_check_branch
        %1525 = sbr.rel (%p1523) target = $region44
      $region43: #{tpu_custom_call.1} parent=5 // pred_region
        %s1526 = ssub.s32 %s13, 2
        // Predicated region
        $region45: #{tpu_custom_call.1} parent=43 // pred_check
          %p1527 = pneg %p131
        $region46: #{tpu_custom_call.1} parent=43 // pred_check_branch
          %1529 = sbr.rel (%p1527) target = $region48
        $region47: #{tpu_custom_call.1} parent=43 // pred_region
          %s1530 = sand.u32 %s116, 1
          %s1531 = scalar_lea.sflag [#allocation4], %s1530
          %s1532 = sand.u32 %s116, 1
          %s1533 = smul.addr %s1532, 128
          %s1534 = scalar_lea.vmem [#allocation3], %s1533
          %1535 = dma.done %s1531, 2048
        $region48: #{tpu_custom_call.1} parent=43 // pred_fallthru
          _
      $region44: #{tpu_custom_call.1} parent=5 // pred_fallthru
        _
    $region6: #{tpu_custom_call.1} parent=1 // loop_footer
      %s17 = sadd.s32 1, %s13
    $region7: #{tpu_custom_call.1} parent=1 // loop_footer_branch
      %12 = sbr.rel target = $region3
    $region8: #{tpu_custom_call.1} parent=1 // loop_exit
      _
    %1536 = vsyncpa [#allocation4], 1
    %s1537 = scalar_lea.sflag [#allocation4], 1
    %1538 = vsyncpa %s1537, 1

</llo_original>
